<compile_context>
chip_gen: v7x
topology: tpu7x:2x2x1
jax: 0.10.0
libtpu: 0.0.40
codegen_flags: <defaults>
</compile_context>

<pallas_src>
import functools

import jax
import jax.numpy as jnp
from jax.experimental import pallas as pl
from jax.experimental.pallas import tpu as pltpu


def mha_kernel(x_ref, wq_ref, wk_ref, bk_ref, wv_ref, wo_ref, bo_ref, o_ref,
               *, num_heads, head_dim):
    # x_ref: (1, S, D) tile for the current batch element (compute dtype).
    x = x_ref[0]                                     # (S, D)
    cdt = x.dtype                                    # MXU input dtype (f32 or bf16)
    S = x.shape[0]
    D = num_heads * head_dim

    # --- QKV projections: MXU in compute dtype, f32 accumulation. ---
    # Q scale (1/sqrt(head_dim)) is already folded into wq on the host.
    # Q and V have no bias; K does (matches the PyTorch module).
    q = jnp.dot(x, wq_ref[...], preferred_element_type=jnp.float32)          # (S, D) f32
    k = jnp.dot(x, wk_ref[...], preferred_element_type=jnp.float32) + bk_ref[...]
    v = jnp.dot(x, wv_ref[...], preferred_element_type=jnp.float32)

    # --- Batched-heads attention: (H, S, hd), no per-head lane-crossing slices. ---
    def to_heads(t):
        return t.astype(cdt).reshape(S, num_heads, head_dim).transpose(1, 0, 2)

    q3 = to_heads(q)                                  # (H, S, hd) compute dtype
    k3 = to_heads(k)
    v3 = to_heads(v)

    # scores: one batched MXU matmul over all heads, f32 accumulation.
    s = jnp.einsum("hqd,hkd->hqk", q3, k3,
                   preferred_element_type=jnp.float32)                        # (H, S, S)

    # Numerically-stable softmax in f32. Normalization is DEFERRED: the exact
    # reciprocal is applied after the PV matmul so the scale is O(H*S*hd), not
    # O(H*S^2), and the result matches the reference to f32 rounding.
    s = s - jnp.max(s, axis=-1, keepdims=True)
    p = jnp.exp(s)
    r = 1.0 / jnp.sum(p, axis=-1, keepdims=True)                              # (H, S, 1) exact

    o3 = jnp.einsum("hqk,hkd->hqd", p.astype(cdt), v3,
                    preferred_element_type=jnp.float32)                        # (H, S, hd) f32
    o3 = o3 * r                                                                # deferred softmax norm

    # --- Output projection (with bias). ---
    attn = o3.transpose(1, 0, 2).reshape(S, D).astype(cdt)                     # (S, D)
    out = jnp.dot(attn, wo_ref[...], preferred_element_type=jnp.float32) + bo_ref[...]
    o_ref[0] = out.astype(o_ref.dtype)


def prepare_params(params, num_heads, compute_dtype=jnp.bfloat16):
    """One-time host-side weight prep: transpose to (in, out), fold the Q scale,
    cast to the MXU compute dtype. Biases stay f32 (added onto f32 accumulators)."""
    D = params["Wq"].shape[0]
    head_dim = D // num_heads
    scale = head_dim ** -0.5
    return {
        "wq": (params["Wq"].T * scale).astype(compute_dtype),   # scale folded in
        "wk": params["Wk"].T.astype(compute_dtype),
        "bk": params["bk"].reshape(1, D).astype(jnp.float32),
        "wv": params["Wv"].T.astype(compute_dtype),
        "wo": params["Wo"].T.astype(compute_dtype),
        "bo": params["bo"].reshape(1, D).astype(jnp.float32),
    }


def multi_head_attention(x, prep, num_heads):
    """x: (B, S, D). prep: output of prepare_params. Output keeps x.dtype."""
    B, S, D = x.shape
    assert D % num_heads == 0, "dim must be divisible by num_heads"
    head_dim = D // num_heads
    out_dtype = x.dtype
    cdt = prep["wq"].dtype
    x = x.astype(cdt)

    kernel = functools.partial(mha_kernel, num_heads=num_heads, head_dim=head_dim)

    # Weights/biases never change across the grid: keep a single whole-array
    # resident VMEM copy instead of a double-buffered per-step block.
    resident = pl.BlockSpec(memory_space=pltpu.MemorySpace.VMEM)

    return pl.pallas_call(
        kernel,
        out_shape=jax.ShapeDtypeStruct((B, S, D), out_dtype),
        grid_spec=pltpu.PrefetchScalarGridSpec(
            num_scalar_prefetch=0,
            grid=(B,),
            in_specs=[
                pl.BlockSpec((1, S, D), lambda b: (b, 0, 0)),  # x (pipelined per batch)
                resident,   # Wq^T (pre-scaled)
                resident,   # Wk^T
                resident,   # bk
                resident,   # Wv^T
                resident,   # Wo^T
                resident,   # bo
            ],
            out_specs=pl.BlockSpec((1, S, D), lambda b: (b, 0, 0)),
        ),
        compiler_params=pltpu.CompilerParams(
            dimension_semantics=("parallel",),        # batch axis -> megacore-shardable
            vmem_limit_bytes=48 * 1024 * 1024,        # headroom below v7x's 64 MiB physical
        ),
    )(x, prep["wq"], prep["wk"], prep["bk"], prep["wv"], prep["wo"], prep["bo"])


def reference_mha(x, params, num_heads):
    """Pure-JAX reference matching the PyTorch forward exactly."""
    B, S, D = x.shape
    hd = D // num_heads
    k = x @ params["Wk"].T + params["bk"]
    q = x @ params["Wq"].T
    v = x @ params["Wv"].T

    def split(t):
        return t.reshape(B, S, num_heads, hd).transpose(0, 2, 1, 3)  # (B, H, S, hd)

    q, k, v = split(q), split(k), split(v)
    s = hd ** 0.5
    attn = jax.nn.softmax(jnp.einsum("bhqd,bhkd->bhqk", q, k) / s, axis=-1)
    o = jnp.einsum("bhqk,bhkd->bhqd", attn, v)
    o = o.transpose(0, 2, 1, 3).reshape(B, S, D)
    return o @ params["Wo"].T + params["bo"]


if __name__ == "__main__":
    B, S, D, H = 2, 8, 32, 4

    key = jax.random.PRNGKey(0)
    keys = jax.random.split(key, 8)
    scale = 1.0 / (D ** 0.5)
    params = {
        "Wk": jax.random.uniform(keys[0], (D, D), jnp.float32, -scale, scale),
        "bk": jax.random.uniform(keys[1], (D,), jnp.float32, -scale, scale),
        "Wq": jax.random.uniform(keys[2], (D, D), jnp.float32, -scale, scale),
        "Wv": jax.random.uniform(keys[3], (D, D), jnp.float32, -scale, scale),
        "Wo": jax.random.uniform(keys[4], (D, D), jnp.float32, -scale, scale),
        "bo": jax.random.uniform(keys[5], (D,), jnp.float32, -scale, scale),
    }
    x = jax.random.normal(keys[6], (B, S, D), jnp.float32)

    ref = reference_mha(x, params, num_heads=H)

    # f32 compute path: tight correctness check against the reference
    # (exact softmax reciprocal -> within 1e-4 of the pure-JAX math).
    prep_f32 = prepare_params(params, num_heads=H, compute_dtype=jnp.float32)
    out = multi_head_attention(x, prep_f32, num_heads=H)
    out = jax.block_until_ready(out)
    assert out.shape == (B, S, D)
    assert jnp.allclose(out, ref, atol=1e-4, rtol=1e-4), "f32 mismatch vs reference"

    # bf16 MXU path (f32 accumulation + f32 softmax inside the kernel).
    prep_bf16 = prepare_params(params, num_heads=H, compute_dtype=jnp.bfloat16)
    out_bf16 = multi_head_attention(x, prep_bf16, num_heads=H)
    out_bf16 = jax.block_until_ready(out_bf16).astype(jnp.float32)
    assert jnp.allclose(out_bf16, ref, atol=5e-2, rtol=5e-2), "bf16 mismatch vs reference"

    print("KERNEL_OK")
</pallas_src>

<mosaic_0001>
module attributes {stable_mosaic.version = 11 : i64} {
  func.func @mha_kernel(%arg0: i32, %arg1: memref<1x8x32xf32, #tpu.memory_space<vmem>>, %arg2: memref<32x32xf32, #tpu.memory_space<vmem>>, %arg3: memref<32x32xf32, #tpu.memory_space<vmem>>, %arg4: memref<1x32xf32, #tpu.memory_space<vmem>>, %arg5: memref<32x32xf32, #tpu.memory_space<vmem>>, %arg6: memref<32x32xf32, #tpu.memory_space<vmem>>, %arg7: memref<1x32xf32, #tpu.memory_space<vmem>>, %arg8: memref<1x8x32xf32, #tpu.memory_space<vmem>>) attributes {dimension_semantics = [#tpu.dimension_semantics<parallel>], iteration_bounds = array<i64: 2>, scalar_prefetch = 0 : i64, scratch_operands = 0 : i64, tpu.core_type = #tpu.core_type<tc>, window_params = [{transform_indices = @transform_0, window_bounds = array<i64: 1, 8, 32>}, {pipeline_mode = #tpu.pipeline_mode<synchronous>, transform_indices = @transform_1, window_bounds = array<i64: 32, 32>}, {pipeline_mode = #tpu.pipeline_mode<synchronous>, transform_indices = @transform_2, window_bounds = array<i64: 32, 32>}, {pipeline_mode = #tpu.pipeline_mode<synchronous>, transform_indices = @transform_3, window_bounds = array<i64: 1, 32>}, {pipeline_mode = #tpu.pipeline_mode<synchronous>, transform_indices = @transform_4, window_bounds = array<i64: 32, 32>}, {pipeline_mode = #tpu.pipeline_mode<synchronous>, transform_indices = @transform_5, window_bounds = array<i64: 32, 32>}, {pipeline_mode = #tpu.pipeline_mode<synchronous>, transform_indices = @transform_6, window_bounds = array<i64: 1, 32>}, {transform_indices = @transform_7, window_bounds = array<i64: 1, 8, 32>}]} {
    %c0 = arith.constant 0 : index
    %c0_0 = arith.constant 0 : index
    %c0_1 = arith.constant 0 : index
    %0 = vector.load %arg1[%c0, %c0_0, %c0_1] : memref<1x8x32xf32, #tpu.memory_space<vmem>>, vector<1x8x32xf32>
    %1 = vector.shape_cast %0 : vector<1x8x32xf32> to vector<8x32xf32>
    %c0_2 = arith.constant 0 : index
    %c0_3 = arith.constant 0 : index
    %2 = vector.load %arg2[%c0_2, %c0_3] : memref<32x32xf32, #tpu.memory_space<vmem>>, vector<32x32xf32>
    %cst = arith.constant dense<0.000000e+00> : vector<8x32xf32>
    %3 = tpu.matmul %1, %2, %cst {dimension_numbers = #tpu.dot_dimension_numbers<[1], [0], [0], [1], [0, 0, 1, 1], [], []>} : vector<8x32xf32>, vector<32x32xf32>, vector<8x32xf32> -> vector<8x32xf32>
    %c0_4 = arith.constant 0 : index
    %c0_5 = arith.constant 0 : index
    %4 = vector.load %arg3[%c0_4, %c0_5] : memref<32x32xf32, #tpu.memory_space<vmem>>, vector<32x32xf32>
    %cst_6 = arith.constant dense<0.000000e+00> : vector<8x32xf32>
    %5 = tpu.matmul %1, %4, %cst_6 {dimension_numbers = #tpu.dot_dimension_numbers<[1], [0], [0], [1], [0, 0, 1, 1], [], []>} : vector<8x32xf32>, vector<32x32xf32>, vector<8x32xf32> -> vector<8x32xf32>
    %c0_7 = arith.constant 0 : index
    %c0_8 = arith.constant 0 : index
    %6 = vector.load %arg4[%c0_7, %c0_8] : memref<1x32xf32, #tpu.memory_space<vmem>>, vector<1x32xf32>
    %7 = vector.broadcast %6 : vector<1x32xf32> to vector<8x32xf32>
    %8 = arith.addf %5, %7 : vector<8x32xf32>
    %c0_9 = arith.constant 0 : index
    %c0_10 = arith.constant 0 : index
    %9 = vector.load %arg5[%c0_9, %c0_10] : memref<32x32xf32, #tpu.memory_space<vmem>>, vector<32x32xf32>
    %cst_11 = arith.constant dense<0.000000e+00> : vector<8x32xf32>
    %10 = tpu.matmul %1, %9, %cst_11 {dimension_numbers = #tpu.dot_dimension_numbers<[1], [0], [0], [1], [0, 0, 1, 1], [], []>} : vector<8x32xf32>, vector<32x32xf32>, vector<8x32xf32> -> vector<8x32xf32>
    %11 = vector.shape_cast %3 : vector<8x32xf32> to vector<8x4x8xf32>
    %12 = tpu.transpose %11, [1, 0, 2] : vector<8x4x8xf32> -> vector<4x8x8xf32>
    %13 = vector.shape_cast %8 : vector<8x32xf32> to vector<8x4x8xf32>
    %14 = tpu.transpose %13, [1, 0, 2] : vector<8x4x8xf32> -> vector<4x8x8xf32>
    %15 = vector.shape_cast %10 : vector<8x32xf32> to vector<8x4x8xf32>
    %16 = tpu.transpose %15, [1, 0, 2] : vector<8x4x8xf32> -> vector<4x8x8xf32>
    "tpu.trace_start"() <{level = 10 : i32, message = "hqd,hkd->hqk"}> : () -> ()
    %cst_12 = arith.constant dense<0.000000e+00> : vector<4x8x8xf32>
    %17 = tpu.matmul %12, %14, %cst_12 {dimension_numbers = #tpu.dot_dimension_numbers<[2], [2], [1], [1], [0, 0, 0, 1, 1, 1], [0], [0]>} : vector<4x8x8xf32>, vector<4x8x8xf32>, vector<4x8x8xf32> -> vector<4x8x8xf32>
    "tpu.trace_stop"() : () -> ()
    %cst_13 = arith.constant dense<0xFF800000> : vector<4x8xf32>
    %18 = vector.multi_reduction <maximumf>, %17, %cst_13 [2] : vector<4x8x8xf32> to vector<4x8xf32>
    %19 = vector.shape_cast %18 : vector<4x8xf32> to vector<4x8x1xf32>
    %20 = vector.broadcast %19 : vector<4x8x1xf32> to vector<4x8x8xf32>
    %21 = arith.subf %17, %20 : vector<4x8x8xf32>
    %22 = math.exp %21 : vector<4x8x8xf32>
    %cst_14 = arith.constant dense<0.000000e+00> : vector<4x8xf32>
    %23 = vector.multi_reduction <add>, %22, %cst_14 [2] : vector<4x8x8xf32> to vector<4x8xf32>
    %24 = vector.shape_cast %23 : vector<4x8xf32> to vector<4x8x1xf32>
    %cst_15 = arith.constant 1.000000e+00 : f32
    %25 = vector.broadcast %cst_15 : f32 to vector<4x8x1xf32>
    %26 = arith.divf %25, %24 : vector<4x8x1xf32>
    "tpu.trace_start"() <{level = 10 : i32, message = "hqk,hkd->hqd"}> : () -> ()
    %cst_16 = arith.constant dense<0.000000e+00> : vector<4x8x8xf32>
    %27 = tpu.matmul %22, %16, %cst_16 {dimension_numbers = #tpu.dot_dimension_numbers<[2], [1], [1], [2], [0, 0, 0, 1, 1, 2], [0], [0]>} : vector<4x8x8xf32>, vector<4x8x8xf32>, vector<4x8x8xf32> -> vector<4x8x8xf32>
    "tpu.trace_stop"() : () -> ()
    %28 = vector.broadcast %26 : vector<4x8x1xf32> to vector<4x8x8xf32>
    %29 = arith.mulf %27, %28 : vector<4x8x8xf32>
    %30 = tpu.transpose %29, [1, 0, 2] : vector<4x8x8xf32> -> vector<8x4x8xf32>
    %31 = vector.shape_cast %30 : vector<8x4x8xf32> to vector<8x32xf32>
    %c0_17 = arith.constant 0 : index
    %c0_18 = arith.constant 0 : index
    %32 = vector.load %arg6[%c0_17, %c0_18] : memref<32x32xf32, #tpu.memory_space<vmem>>, vector<32x32xf32>
    %cst_19 = arith.constant dense<0.000000e+00> : vector<8x32xf32>
    %33 = tpu.matmul %31, %32, %cst_19 {dimension_numbers = #tpu.dot_dimension_numbers<[1], [0], [0], [1], [0, 0, 1, 1], [], []>} : vector<8x32xf32>, vector<32x32xf32>, vector<8x32xf32> -> vector<8x32xf32>
    %c0_20 = arith.constant 0 : index
    %c0_21 = arith.constant 0 : index
    %34 = vector.load %arg7[%c0_20, %c0_21] : memref<1x32xf32, #tpu.memory_space<vmem>>, vector<1x32xf32>
    %35 = vector.broadcast %34 : vector<1x32xf32> to vector<8x32xf32>
    %36 = arith.addf %33, %35 : vector<8x32xf32>
    %c0_22 = arith.constant 0 : index
    %c0_23 = arith.constant 0 : index
    %c0_24 = arith.constant 0 : index
    %37 = vector.load %arg8[%c0_22, %c0_23, %c0_24] : memref<1x8x32xf32, #tpu.memory_space<vmem>>, vector<1x8x32xf32>
    %38 = vector.shape_cast %37 : vector<1x8x32xf32> to vector<8x32xf32>
    %39 = vector.shape_cast %36 : vector<8x32xf32> to vector<1x8x32xf32>
    tpu.vector_store %arg8[%c0_22, %c0_23, %c0_24], %39 {strides = array<i32>} : memref<1x8x32xf32, #tpu.memory_space<vmem>>, vector<1x8x32xf32>,
    return
  }
  func.func @transform_0(%arg0: i32) -> (i32, i32, i32) {
    %c0_i32 = arith.constant 0 : i32
    %c0_i32_0 = arith.constant 0 : i32
    %c0_i32_1 = arith.constant 0 : i32
    return %arg0, %c0_i32, %c0_i32_0 : i32, i32, i32
  }
  func.func @transform_1(%arg0: i32) -> (i32, i32) {
    %c0_i32 = arith.constant 0 : i32
    %c0_i32_0 = arith.constant 0 : i32
    %c0_i32_1 = arith.constant 0 : i32
    return %c0_i32, %c0_i32_0 : i32, i32
  }
  func.func @transform_2(%arg0: i32) -> (i32, i32) {
    %c0_i32 = arith.constant 0 : i32
    %c0_i32_0 = arith.constant 0 : i32
    %c0_i32_1 = arith.constant 0 : i32
    return %c0_i32, %c0_i32_0 : i32, i32
  }
  func.func @transform_3(%arg0: i32) -> (i32, i32) {
    %c0_i32 = arith.constant 0 : i32
    %c0_i32_0 = arith.constant 0 : i32
    %c0_i32_1 = arith.constant 0 : i32
    return %c0_i32, %c0_i32_0 : i32, i32
  }
  func.func @transform_4(%arg0: i32) -> (i32, i32) {
    %c0_i32 = arith.constant 0 : i32
    %c0_i32_0 = arith.constant 0 : i32
    %c0_i32_1 = arith.constant 0 : i32
    return %c0_i32, %c0_i32_0 : i32, i32
  }
  func.func @transform_5(%arg0: i32) -> (i32, i32) {
    %c0_i32 = arith.constant 0 : i32
    %c0_i32_0 = arith.constant 0 : i32
    %c0_i32_1 = arith.constant 0 : i32
    return %c0_i32, %c0_i32_0 : i32, i32
  }
  func.func @transform_6(%arg0: i32) -> (i32, i32) {
    %c0_i32 = arith.constant 0 : i32
    %c0_i32_0 = arith.constant 0 : i32
    %c0_i32_1 = arith.constant 0 : i32
    return %c0_i32, %c0_i32_0 : i32, i32
  }
  func.func @transform_7(%arg0: i32) -> (i32, i32, i32) {
    %c0_i32 = arith.constant 0 : i32
    %c0_i32_0 = arith.constant 0 : i32
    %c0_i32_1 = arith.constant 0 : i32
    return %arg0, %c0_i32, %c0_i32_0 : i32, i32, i32
  }
}

</mosaic_0001>

<llo_original>
// kernel: tpu_custom_call.1
$region0: #{tpu_custom_call.1}
  #allocation0 [shape = 'u32[]', space=smem, size = 0x4, offset = 0x4, fixed_abs, tag = 'smem constant byte address 0x4 - core index']
  #allocation1 [shape = 'u32[144,128]{1,0:T(1,128)}', space=vmem, size = 0x12000, scoped, tag = 'internal scratch']
  %s0 = inlined_call_operand.hbm [shape: f32[2,8,32], index: 0, kind: input, shape index: {}]
  %s1 = inlined_call_operand.hbm [shape: f32[32,32], index: 1, kind: input, shape index: {}]
  %s2 = inlined_call_operand.hbm [shape: f32[32,32], index: 2, kind: input, shape index: {}]
  %s3 = inlined_call_operand.vmem [shape: f32[1,32], index: 3, kind: input, shape index: {}]
  %s4 = inlined_call_operand.hbm [shape: f32[32,32], index: 4, kind: input, shape index: {}]
  %s5 = inlined_call_operand.hbm [shape: f32[32,32], index: 5, kind: input, shape index: {}]
  %s6 = inlined_call_operand.vmem [shape: f32[1,32], index: 6, kind: input, shape index: {}]
  %s7 = inlined_call_operand.hbm [shape: f32[2,8,32], index: 7, kind: output, shape index: {}]
  %s8 = sld [smem:[#allocation0]]
  $region81: #{tpu_custom_call.1} parent=0
    _
  %s10 = ssub.s32 1, %s8
  %s11 = scalar_select 0, %s10, %s8
  $region1: #{tpu_custom_call.1} parent=0
    #allocation2 [shape = 'u8[8192]{0}', space=vmem, size = 0x2000, scoped, tag = 'input window, operand 0']
    #allocation3 [shape = 's32[2]{0}', space=sflag, size = 0x8, scoped, tag = 'scoped memory for tpu_custom_call.1']
    #allocation4 [shape = 's32[2]{0}', space=sflag, size = 0x8, scoped, tag = 'scoped memory for tpu_custom_call.1']
    #allocation5 [shape = 'u8[16384]{0}', space=vmem, size = 0x4000, scoped, tag = 'input window, operand 1, single buffered']
    #allocation6 [shape = 's32[1]{0}', space=sflag, size = 0x4, scoped, tag = 'scoped memory for tpu_custom_call.1']
    #allocation7 [shape = 'u8[16384]{0}', space=vmem, size = 0x4000, scoped, tag = 'input window, operand 2, single buffered']
    #allocation8 [shape = 'u8[16384]{0}', space=vmem, size = 0x4000, scoped, tag = 'input window, operand 4, single buffered']
    #allocation9 [shape = 's32[1]{0}', space=sflag, size = 0x4, scoped, tag = 'scoped memory for tpu_custom_call.1']
    #allocation10 [shape = 'u8[16384]{0}', space=vmem, size = 0x4000, scoped, tag = 'input window, operand 5, single buffered']
    #allocation11 [shape = 'u8[8192]{0}', space=vmem, size = 0x2000, scoped, tag = 'output window, operand 0']
    %12 = vsyncpa [#allocation3], 0
    %s13 = scalar_lea.sflag [#allocation3], 1
    %14 = vsyncpa %s13, 0
    %15 = vsyncpa [#allocation6], 0
    %16 = vsyncpa [#allocation9], 0
    %17 = vsyncpa [#allocation4], 0
    %s18 = scalar_lea.sflag [#allocation4], 1
    %19 = vsyncpa %s18, 0
    loop: start=0, step=1, limit=4
    $region2: #{tpu_custom_call.1} parent=1 // loop_pre_header
      _
    $region3: #{tpu_custom_call.1} parent=1 // loop_header
      %s21 = sphi 0, %s25
      %p22 = scmp.ge.s32.totalorder %s21, 4
      %s31 = sphi 0, %s33
      %s34 = sphi 0, %s31
      %s35 = sphi 0, %s34
      %s51 = sphi 0, %s35
      %s55 = sphi 0, %s55
      %s57 = sphi 0, %s55
      %s58 = sphi 0, %s57
      %s72 = sphi 0, %s58
      %s76 = sphi 0, %s76
      %s78 = sphi 0, %s76
      %s79 = sphi 0, %s78
      %s93 = sphi 0, %s79
      %s97 = sphi 0, %s97
      %s99 = sphi 0, %s97
      %s100 = sphi 0, %s99
      %s114 = sphi 0, %s100
      %s118 = sphi 0, %s118
      %s120 = sphi 0, %s118
      %s121 = sphi 0, %s120
      %s135 = sphi 0, %s121
      %s139 = sphi 0, %s139
      %s141 = sphi 0, %s139
      %s142 = sphi 0, %s141
      %s156 = sphi 0, %s142
      %s160 = sphi 0, %s160
      %s162 = sphi 0, %s160
      %s163 = sphi 0, %s162
      %s177 = sphi 0, %s163
      %s183 = sphi 0, %s185
      %s186 = sphi 0, %s183
      %s187 = sphi 0, %s186
      %s203 = sphi 0, %s187
    $region4: #{tpu_custom_call.1} parent=1 // loop_header_branch
      %24 = sbr.rel (%p22) target = $region8
    $region5: #{tpu_custom_call.1} parent=1 // loop_body
      %s26 = ssub.s32 %s21, 1
      %s27 = ssub.s32 %s21, 2
      %s28 = sadd.s32 %s21, 1
      %s29 = ssub.s32 %s21, %s28
      %p30 = scmp.eq.s32.totalorder %s29, 0
      %s32 = sadd.s32 %s31, 1
      %s33 = scalar_select %p30, %s31, %s32
      %p36 = pneg %p30
      %p37 = scmp.eq.s32.totalorder %s21, 1
      %p38 = por %p36, %p37
      %p39 = scmp.ne.s32.totalorder %s31, %s34
      %p40 = scmp.eq.s32.totalorder %s21, 0
      %p41 = por %p39, %p40
      %p42 = scmp.ne.s32.totalorder %s31, %s34
      %p43 = scmp.eq.s32.totalorder %s26, 1
      %p44 = por %p42, %p43
      %p45 = scmp.ne.s32.totalorder %s34, %s35
      %p46 = scmp.eq.s32.totalorder %s26, 0
      %p47 = por %p45, %p46
      %p48 = scmp.ne.s32.totalorder %s34, %s35
      %p49 = scmp.eq.s32.totalorder %s27, 1
      %p50 = por %p48, %p49
      %p52 = scmp.ne.s32.totalorder %s35, %s51
      %p53 = scmp.eq.s32.totalorder %s27, 0
      %p54 = por %p52, %p53
      %s56 = sadd.s32 %s55, 1
      %p59 = scmp.eq.s32.totalorder %s21, 1
      %p60 = scmp.ne.s32.totalorder %s55, %s57
      %p61 = scmp.eq.s32.totalorder %s21, 0
      %p62 = por %p60, %p61
      %p63 = scmp.ne.s32.totalorder %s55, %s57
      %p64 = scmp.eq.s32.totalorder %s26, 1
      %p65 = por %p63, %p64
      %p66 = scmp.ne.s32.totalorder %s57, %s58
      %p67 = scmp.eq.s32.totalorder %s26, 0
      %p68 = por %p66, %p67
      %p69 = scmp.ne.s32.totalorder %s57, %s58
      %p70 = scmp.eq.s32.totalorder %s27, 1
      %p71 = por %p69, %p70
      %p73 = scmp.ne.s32.totalorder %s58, %s72
      %p74 = scmp.eq.s32.totalorder %s27, 0
      %p75 = por %p73, %p74
      %s77 = sadd.s32 %s76, 1
      %p80 = scmp.eq.s32.totalorder %s21, 1
      %p81 = scmp.ne.s32.totalorder %s76, %s78
      %p82 = scmp.eq.s32.totalorder %s21, 0
      %p83 = por %p81, %p82
      %p84 = scmp.ne.s32.totalorder %s76, %s78
      %p85 = scmp.eq.s32.totalorder %s26, 1
      %p86 = por %p84, %p85
      %p87 = scmp.ne.s32.totalorder %s78, %s79
      %p88 = scmp.eq.s32.totalorder %s26, 0
      %p89 = por %p87, %p88
      %p90 = scmp.ne.s32.totalorder %s78, %s79
      %p91 = scmp.eq.s32.totalorder %s27, 1
      %p92 = por %p90, %p91
      %p94 = scmp.ne.s32.totalorder %s79, %s93
      %p95 = scmp.eq.s32.totalorder %s27, 0
      %p96 = por %p94, %p95
      %s98 = sadd.s32 %s97, 1
      %p101 = scmp.eq.s32.totalorder %s21, 1
      %p102 = scmp.ne.s32.totalorder %s97, %s99
      %p103 = scmp.eq.s32.totalorder %s21, 0
      %p104 = por %p102, %p103
      %p105 = scmp.ne.s32.totalorder %s97, %s99
      %p106 = scmp.eq.s32.totalorder %s26, 1
      %p107 = por %p105, %p106
      %p108 = scmp.ne.s32.totalorder %s99, %s100
      %p109 = scmp.eq.s32.totalorder %s26, 0
      %p110 = por %p108, %p109
      %p111 = scmp.ne.s32.totalorder %s99, %s100
      %p112 = scmp.eq.s32.totalorder %s27, 1
      %p113 = por %p111, %p112
      %p115 = scmp.ne.s32.totalorder %s100, %s114
      %p116 = scmp.eq.s32.totalorder %s27, 0
      %p117 = por %p115, %p116
      %s119 = sadd.s32 %s118, 1
      %p122 = scmp.eq.s32.totalorder %s21, 1
      %p123 = scmp.ne.s32.totalorder %s118, %s120
      %p124 = scmp.eq.s32.totalorder %s21, 0
      %p125 = por %p123, %p124
      %p126 = scmp.ne.s32.totalorder %s118, %s120
      %p127 = scmp.eq.s32.totalorder %s26, 1
      %p128 = por %p126, %p127
      %p129 = scmp.ne.s32.totalorder %s120, %s121
      %p130 = scmp.eq.s32.totalorder %s26, 0
      %p131 = por %p129, %p130
      %p132 = scmp.ne.s32.totalorder %s120, %s121
      %p133 = scmp.eq.s32.totalorder %s27, 1
      %p134 = por %p132, %p133
      %p136 = scmp.ne.s32.totalorder %s121, %s135
      %p137 = scmp.eq.s32.totalorder %s27, 0
      %p138 = por %p136, %p137
      %s140 = sadd.s32 %s139, 1
      %p143 = scmp.eq.s32.totalorder %s21, 1
      %p144 = scmp.ne.s32.totalorder %s139, %s141
      %p145 = scmp.eq.s32.totalorder %s21, 0
      %p146 = por %p144, %p145
      %p147 = scmp.ne.s32.totalorder %s139, %s141
      %p148 = scmp.eq.s32.totalorder %s26, 1
      %p149 = por %p147, %p148
      %p150 = scmp.ne.s32.totalorder %s141, %s142
      %p151 = scmp.eq.s32.totalorder %s26, 0
      %p152 = por %p150, %p151
      %p153 = scmp.ne.s32.totalorder %s141, %s142
      %p154 = scmp.eq.s32.totalorder %s27, 1
      %p155 = por %p153, %p154
      %p157 = scmp.ne.s32.totalorder %s142, %s156
      %p158 = scmp.eq.s32.totalorder %s27, 0
      %p159 = por %p157, %p158
      %s161 = sadd.s32 %s160, 1
      %p164 = scmp.eq.s32.totalorder %s21, 1
      %p165 = scmp.ne.s32.totalorder %s160, %s162
      %p166 = scmp.eq.s32.totalorder %s21, 0
      %p167 = por %p165, %p166
      %p168 = scmp.ne.s32.totalorder %s160, %s162
      %p169 = scmp.eq.s32.totalorder %s26, 1
      %p170 = por %p168, %p169
      %p171 = scmp.ne.s32.totalorder %s162, %s163
      %p172 = scmp.eq.s32.totalorder %s26, 0
      %p173 = por %p171, %p172
      %p174 = scmp.ne.s32.totalorder %s162, %s163
      %p175 = scmp.eq.s32.totalorder %s27, 1
      %p176 = por %p174, %p175
      %p178 = scmp.ne.s32.totalorder %s163, %s177
      %p179 = scmp.eq.s32.totalorder %s27, 0
      %p180 = por %p178, %p179
      %s181 = ssub.s32 %s21, %s28
      %p182 = scmp.eq.s32.totalorder %s181, 0
      %s184 = sadd.s32 %s183, 1
      %s185 = scalar_select %p182, %s183, %s184
      %p188 = pneg %p182
      %p189 = scmp.eq.s32.totalorder %s21, 1
      %p190 = por %p188, %p189
      %p191 = scmp.ne.s32.totalorder %s183, %s186
      %p192 = scmp.eq.s32.totalorder %s21, 0
      %p193 = por %p191, %p192
      %p194 = scmp.ne.s32.totalorder %s183, %s186
      %p195 = scmp.eq.s32.totalorder %s26, 1
      %p196 = por %p194, %p195
      %p197 = scmp.ne.s32.totalorder %s186, %s187
      %p198 = scmp.eq.s32.totalorder %s26, 0
      %p199 = por %p197, %p198
      %p200 = scmp.ne.s32.totalorder %s186, %s187
      %p201 = scmp.eq.s32.totalorder %s27, 1
      %p202 = por %p200, %p201
      %p204 = scmp.ne.s32.totalorder %s187, %s203
      %p205 = scmp.eq.s32.totalorder %s27, 0
      %p206 = por %p204, %p205
      %p207 = scmp.le.s32.totalorder 1, %s21
      %p208 = scmp.lt.s32.totalorder %s21, 3
      %p209 = pnand %p207, %p208
      %p210 = pneg %p209
      // Predicated region
      $region9: #{tpu_custom_call.1} parent=5 // pred_check
        _
      $region10: #{tpu_custom_call.1} parent=5 // pred_check_branch
        %212 = sbr.rel (%p209) target = $region12
      $region11: #{tpu_custom_call.1} parent=5 // pred_region
        %s213 = ssub.s32 %s21, 1
        // Predicated region
        $region13: #{tpu_custom_call.1} parent=11 // pred_check
          %p214 = pneg %p68
        $region14: #{tpu_custom_call.1} parent=11 // pred_check_branch
          %216 = sbr.rel (%p214) target = $region16
        $region15: #{tpu_custom_call.1} parent=11 // pred_region
          %s218 = ssub.s32 512, 512
          %219 = vsyncadd [#allocation6], %s218
          %s220 = sshll.u32 [#allocation5], 4
          %s221 = int_to_ptr.vmem [resolvable:$true] %s220
          %226 = dma.hbm_to_vmem [thread:$0]  %s1, 512, %s221, [#allocation6], 128, 128, 8
        $region16: #{tpu_custom_call.1} parent=11 // pred_fallthru
          _
        // Predicated region
        $region17: #{tpu_custom_call.1} parent=11 // pred_check
          %p227 = pneg %p89
        $region18: #{tpu_custom_call.1} parent=11 // pred_check_branch
          %229 = sbr.rel (%p227) target = $region20
        $region19: #{tpu_custom_call.1} parent=11 // pred_region
          %s231 = ssub.s32 512, 512
          %232 = vsyncadd [#allocation6], %s231
          %s233 = sshll.u32 [#allocation7], 4
          %s234 = int_to_ptr.vmem [resolvable:$true] %s233
          %239 = dma.hbm_to_vmem [thread:$0]  %s2, 512, %s234, [#allocation6], 128, 128, 8
        $region20: #{tpu_custom_call.1} parent=11 // pred_fallthru
          _
        // Predicated region
        $region21: #{tpu_custom_call.1} parent=11 // pred_check
          %p240 = pneg %p110
        $region22: #{tpu_custom_call.1} parent=11 // pred_check_branch
          %242 = sbr.rel (%p240) target = $region24
        $region23: #{tpu_custom_call.1} parent=11 // pred_region
          _
        $region24: #{tpu_custom_call.1} parent=11 // pred_fallthru
          _
        // Predicated region
        $region25: #{tpu_custom_call.1} parent=11 // pred_check
          %p243 = pneg %p131
        $region26: #{tpu_custom_call.1} parent=11 // pred_check_branch
          %245 = sbr.rel (%p243) target = $region28
        $region27: #{tpu_custom_call.1} parent=11 // pred_region
          %s247 = ssub.s32 512, 512
          %248 = vsyncadd [#allocation9], %s247
          %s249 = sshll.u32 [#allocation8], 4
          %s250 = int_to_ptr.vmem [resolvable:$true] %s249
          %255 = dma.hbm_to_vmem [thread:$0]  %s4, 512, %s250, [#allocation9], 128, 128, 8
        $region28: #{tpu_custom_call.1} parent=11 // pred_fallthru
          _
        // Predicated region
        $region29: #{tpu_custom_call.1} parent=11 // pred_check
          %p256 = pneg %p152
        $region30: #{tpu_custom_call.1} parent=11 // pred_check_branch
          %258 = sbr.rel (%p256) target = $region32
        $region31: #{tpu_custom_call.1} parent=11 // pred_region
          %s260 = ssub.s32 512, 512
          %261 = vsyncadd [#allocation9], %s260
          %s262 = sshll.u32 [#allocation10], 4
          %s263 = int_to_ptr.vmem [resolvable:$true] %s262
          %268 = dma.hbm_to_vmem [thread:$0]  %s5, 512, %s263, [#allocation9], 128, 128, 8
        $region32: #{tpu_custom_call.1} parent=11 // pred_fallthru
          _
        // Predicated region
        $region33: #{tpu_custom_call.1} parent=11 // pred_check
          %p269 = pneg %p173
        $region34: #{tpu_custom_call.1} parent=11 // pred_check_branch
          %271 = sbr.rel (%p269) target = $region36
        $region35: #{tpu_custom_call.1} parent=11 // pred_region
          _
        $region36: #{tpu_custom_call.1} parent=11 // pred_fallthru
          _
      $region12: #{tpu_custom_call.1} parent=5 // pred_fallthru
        _
      %p272 = scmp.lt.s32.totalorder %s21, 2
      // Predicated region
      $region37: #{tpu_custom_call.1} parent=5 // pred_check
        %p273 = pneg %p272
      $region38: #{tpu_custom_call.1} parent=5 // pred_check_branch
        %275 = sbr.rel (%p273) target = $region40
      $region39: #{tpu_custom_call.1} parent=5 // pred_region
        // Predicated region
        $region41: #{tpu_custom_call.1} parent=39 // pred_check
          %p276 = pneg %p41
        $region42: #{tpu_custom_call.1} parent=39 // pred_check_branch
          %278 = sbr.rel (%p276) target = $region44
        $region43: #{tpu_custom_call.1} parent=39 // pred_region
          %s279 = sand.u32 %s31, 1
          %s280 = scalar_lea.sflag [#allocation3], %s279
          %s281 = sand.u32 %s31, 1
          %s282 = smul.addr %s281, 8
          %s283 = scalar_lea.vmem [#allocation2], %s282
          %s285 = ssub.s32 128, 128
          %286 = vsyncadd %s280, %s285
          %s287 = smul.addr %s21, 128
          %s288 = scalar_lea.hbm %s0, %s287
          %s290 = sshll.u32 %s283, 4
          %s291 = int_to_ptr.vmem [resolvable:$true] %s290
          %293 = dma.hbm_to_vmem [thread:$0]  %s288, 128, %s291, %s280
        $region44: #{tpu_custom_call.1} parent=39 // pred_fallthru
          _
      $region40: #{tpu_custom_call.1} parent=5 // pred_fallthru
        _
      %p294 = scmp.le.s32.totalorder 1, %s21
      %p295 = scmp.lt.s32.totalorder %s21, 3
      %p296 = pnand %p294, %p295
      %p297 = pneg %p296
      // Predicated region
      $region45: #{tpu_custom_call.1} parent=5 // pred_check
        _
      $region46: #{tpu_custom_call.1} parent=5 // pred_check_branch
        %299 = sbr.rel (%p296) target = $region48
      $region47: #{tpu_custom_call.1} parent=5 // pred_region
        %s300 = ssub.s32 %s21, 1
        %s301 = sand.u32 %s34, 1
        %s302 = scalar_lea.sflag [#allocation3], %s301
        %s303 = sand.u32 %s34, 1
        %s304 = smul.addr %s303, 8
        %s305 = scalar_lea.vmem [#allocation2], %s304
        // Predicated region
        $region49: #{tpu_custom_call.1} parent=47 // pred_check
          %p306 = pneg %p47
        $region50: #{tpu_custom_call.1} parent=47 // pred_check_branch
          %308 = sbr.rel (%p306) target = $region52
        $region51: #{tpu_custom_call.1} parent=47 // pred_region
          %309 = dma.done %s302, 128
        $region52: #{tpu_custom_call.1} parent=47 // pred_fallthru
          _
        // Predicated region
        $region53: #{tpu_custom_call.1} parent=47 // pred_check
          %p310 = pneg %p68
        $region54: #{tpu_custom_call.1} parent=47 // pred_check_branch
          %312 = sbr.rel (%p310) target = $region56
        $region55: #{tpu_custom_call.1} parent=47 // pred_region
          %313 = dma.done [#allocation6], 512
        $region56: #{tpu_custom_call.1} parent=47 // pred_fallthru
          _
        // Predicated region
        $region57: #{tpu_custom_call.1} parent=47 // pred_check
          %p314 = pneg %p89
        $region58: #{tpu_custom_call.1} parent=47 // pred_check_branch
          %316 = sbr.rel (%p314) target = $region60
        $region59: #{tpu_custom_call.1} parent=47 // pred_region
          %317 = dma.done [#allocation6], 512
        $region60: #{tpu_custom_call.1} parent=47 // pred_fallthru
          _
        // Predicated region
        $region61: #{tpu_custom_call.1} parent=47 // pred_check
          %p318 = pneg %p131
        $region62: #{tpu_custom_call.1} parent=47 // pred_check_branch
          %320 = sbr.rel (%p318) target = $region64
        $region63: #{tpu_custom_call.1} parent=47 // pred_region
          %321 = dma.done [#allocation9], 512
        $region64: #{tpu_custom_call.1} parent=47 // pred_fallthru
          _
        // Predicated region
        $region65: #{tpu_custom_call.1} parent=47 // pred_check
          %p322 = pneg %p152
        $region66: #{tpu_custom_call.1} parent=47 // pred_check_branch
          %324 = sbr.rel (%p322) target = $region68
        $region67: #{tpu_custom_call.1} parent=47 // pred_region
          %325 = dma.done [#allocation9], 512
        $region68: #{tpu_custom_call.1} parent=47 // pred_fallthru
          _
        %s326 = sand.u32 %s34, 1
        %s327 = scalar_lea.sflag [#allocation3], %s326
        %s328 = sand.u32 %s34, 1
        %s329 = smul.addr %s328, 8
        %s330 = scalar_lea.vmem [#allocation2], %s329
        %p331 = pneg %p47
        %p332 = pneg %p44
        %p333 = pneg %p68
        %p334 = pneg %p65
        %p335 = pneg %p89
        %p336 = pneg %p86
        %p337 = pneg %p110
        %p338 = pneg %p107
        %p339 = pneg %p131
        %p340 = pneg %p128
        %p341 = pneg %p152
        %p342 = pneg %p149
        %p343 = pneg %p173
        %p344 = pneg %p170
        %p345 = pneg %p199
        %p346 = pneg %p196
        %s347 = sand.u32 %s186, 1
        %s348 = scalar_lea.sflag [#allocation4], %s347
        %s349 = sand.u32 %s186, 1
        %s350 = smul.addr %s349, 8
        %s351 = scalar_lea.vmem [#allocation11], %s350
        %v352 = vld [vmem:[%s305] sm:$0xff]
        %v353 = vld [vmem:[#allocation5] sm:$0xff]
        %v354 = vld [vmem:[#allocation5 + $0x8] sm:$0xff]
        %v355 = vld [vmem:[#allocation5 + $0x10] sm:$0xff]
        %v356 = vld [vmem:[#allocation5 + $0x18] sm:$0xff]
        %vm357 = vcmask 261120
        %v359 = vsel %vm357, %v352, 0
        %361 = vmatprep.subr.mxu0 0.0
        %362 = vmatpush1.msra.mxu0 %v353
        %363 = vmatprep.subr.mxu0 0.0
        %364 = vmatpush1.msra.mxu0 %v354
        %365 = vmatprep.subr.mxu0 0.0
        %366 = vmatpush1.msra.mxu0 %v355
        %367 = vmatprep.subr.mxu0 0.0
        %368 = vmatpush1.msra.mxu0 %v356
        %369 = vmatprep.subr.mxu0 0.0
        %370 = vmatpush1.msra.mxu0 0.0
        %371 = vmatprep.subr.mxu0 0.0
        %372 = vmatpush1.msra.mxu0 0.0
        %373 = vmatprep.subr.mxu0 0.0
        %374 = vmatpush1.msra.mxu0 0.0
        %375 = vmatprep.subr.mxu0 0.0
        %376 = vmatpush1.msra.mxu0 0.0
        %377 = vmatprep.subr.mxu0 0.0
        %378 = vmatpush1.msra.mxu0 0.0
        %379 = vmatprep.subr.mxu0 0.0
        %380 = vmatpush1.msra.mxu0 0.0
        %381 = vmatprep.subr.mxu0 0.0
        %382 = vmatpush1.msra.mxu0 0.0
        %383 = vmatprep.subr.mxu0 0.0
        %384 = vmatpush1.msra.mxu0 0.0
        %385 = vmatprep.subr.mxu0 0.0
        %386 = vmatpush1.msra.mxu0 0.0
        %387 = vmatprep.subr.mxu0 0.0
        %388 = vmatpush1.msra.mxu0 0.0
        %389 = vmatprep.subr.mxu0 0.0
        %390 = vmatpush1.msra.mxu0 0.0
        %391 = vmatprep.subr.mxu0 0.0
        %392 = vmatpush1.msra.mxu0 0.0
        %393 = vmatprep.subr.mxu0 0.0
        %394 = vmatpush1.msra.mxu0 0.0
        %395 = vmatprep.subr.mxu0 0.0
        %396 = vmatpush1.msra.mxu0 0.0
        %397 = vmatprep.subr.mxu0 0.0
        %398 = vmatpush1.msra.mxu0 0.0
        %399 = vmatprep.subr.mxu0 0.0
        %400 = vmatpush1.msra.mxu0 0.0
        %401 = vmatprep.subr.mxu0 0.0
        %402 = vmatpush1.msra.mxu0 0.0
        %403 = vmatprep.subr.mxu0 0.0
        %404 = vmatpush1.msra.mxu0 0.0
        %405 = vmatprep.subr.mxu0 0.0
        %406 = vmatpush1.msra.mxu0 0.0
        %407 = vmatprep.subr.mxu0 0.0
        %408 = vmatpush1.msra.mxu0 0.0
        %409 = vmatprep.subr.mxu0 0.0
        %410 = vmatpush1.msra.mxu0 0.0
        %411 = vmatprep.subr.mxu0 0.0
        %412 = vmatpush1.msra.mxu0 0.0
        %413 = vmatprep.subr.mxu0 0.0
        %414 = vmatpush1.msra.mxu0 0.0
        %415 = vmatprep.subr.mxu0 0.0
        %416 = vmatpush1.msra.mxu0 0.0
        %417 = vmatprep.subr.mxu0 0.0
        %418 = vmatpush1.msra.mxu0 0.0
        %419 = vmatprep.subr.mxu0 0.0
        %420 = vmatpush1.msra.mxu0 0.0
        %421 = vmatprep.subr.mxu0 0.0
        %422 = vmatpush1.msra.mxu0 0.0
        %423 = vmatprep.subr.mxu0 0.0
        %424 = vmatpush1.msra.mxu0 0.0
        %425 = vmatprep.mubr.f32.mxu0 0.0
        %426 = vmatmul.mubr.f32.gmra.mrb[0].mxu0 %v359
        %v427 = vpop.f32.mrb[0].mxu0
        %v428 = vadd.f32 0.0, %v427
        %v429 = vpop.f32.mrb[0].mxu0
        %430 = vdwg.mxu0
        %v431 = vld [vmem:[#allocation7] sm:$0xff]
        %v432 = vld [vmem:[#allocation7 + $0x8] sm:$0xff]
        %v433 = vld [vmem:[#allocation7 + $0x10] sm:$0xff]
        %v434 = vld [vmem:[#allocation7 + $0x18] sm:$0xff]
        %v435 = vld [vmem:[%s3] sm:$0x1]
        %v437 = vlaneseq
        %v438 = vshrl.u32 %v437, 7
        %v439 = vsub.s32 0, %v438
        %v440 = vrot.slane %v435, %v439
        %442 = vmatprep.subr.mxu0 0.0
        %443 = vmatpush1.msra.mxu0 %v431
        %444 = vmatprep.subr.mxu0 0.0
        %445 = vmatpush1.msra.mxu0 %v432
        %446 = vmatprep.subr.mxu0 0.0
        %447 = vmatpush1.msra.mxu0 %v433
        %448 = vmatprep.subr.mxu0 0.0
        %449 = vmatpush1.msra.mxu0 %v434
        %450 = vmatprep.subr.mxu0 0.0
        %451 = vmatpush1.msra.mxu0 0.0
        %452 = vmatprep.subr.mxu0 0.0
        %453 = vmatpush1.msra.mxu0 0.0
        %454 = vmatprep.subr.mxu0 0.0
        %455 = vmatpush1.msra.mxu0 0.0
        %456 = vmatprep.subr.mxu0 0.0
        %457 = vmatpush1.msra.mxu0 0.0
        %458 = vmatprep.subr.mxu0 0.0
        %459 = vmatpush1.msra.mxu0 0.0
        %460 = vmatprep.subr.mxu0 0.0
        %461 = vmatpush1.msra.mxu0 0.0
        %462 = vmatprep.subr.mxu0 0.0
        %463 = vmatpush1.msra.mxu0 0.0
        %464 = vmatprep.subr.mxu0 0.0
        %465 = vmatpush1.msra.mxu0 0.0
        %466 = vmatprep.subr.mxu0 0.0
        %467 = vmatpush1.msra.mxu0 0.0
        %468 = vmatprep.subr.mxu0 0.0
        %469 = vmatpush1.msra.mxu0 0.0
        %470 = vmatprep.subr.mxu0 0.0
        %471 = vmatpush1.msra.mxu0 0.0
        %472 = vmatprep.subr.mxu0 0.0
        %473 = vmatpush1.msra.mxu0 0.0
        %474 = vmatprep.subr.mxu0 0.0
        %475 = vmatpush1.msra.mxu0 0.0
        %476 = vmatprep.subr.mxu0 0.0
        %477 = vmatpush1.msra.mxu0 0.0
        %478 = vmatprep.subr.mxu0 0.0
        %479 = vmatpush1.msra.mxu0 0.0
        %480 = vmatprep.subr.mxu0 0.0
        %481 = vmatpush1.msra.mxu0 0.0
        %482 = vmatprep.subr.mxu0 0.0
        %483 = vmatpush1.msra.mxu0 0.0
        %484 = vmatprep.subr.mxu0 0.0
        %485 = vmatpush1.msra.mxu0 0.0
        %486 = vmatprep.subr.mxu0 0.0
        %487 = vmatpush1.msra.mxu0 0.0
        %488 = vmatprep.subr.mxu0 0.0
        %489 = vmatpush1.msra.mxu0 0.0
        %490 = vmatprep.subr.mxu0 0.0
        %491 = vmatpush1.msra.mxu0 0.0
        %492 = vmatprep.subr.mxu0 0.0
        %493 = vmatpush1.msra.mxu0 0.0
        %494 = vmatprep.subr.mxu0 0.0
        %495 = vmatpush1.msra.mxu0 0.0
        %496 = vmatprep.subr.mxu0 0.0
        %497 = vmatpush1.msra.mxu0 0.0
        %498 = vmatprep.subr.mxu0 0.0
        %499 = vmatpush1.msra.mxu0 0.0
        %500 = vmatprep.subr.mxu0 0.0
        %501 = vmatpush1.msra.mxu0 0.0
        %502 = vmatprep.subr.mxu0 0.0
        %503 = vmatpush1.msra.mxu0 0.0
        %504 = vmatprep.subr.mxu0 0.0
        %505 = vmatpush1.msra.mxu0 0.0
        %506 = vmatprep.mubr.f32.mxu0 0.0
        %507 = vmatmul.mubr.f32.gmra.mrb[0].mxu0 %v359
        %v508 = vpop.f32.mrb[0].mxu0
        %v509 = vadd.f32 %v440, %v508
        %v510 = vpop.f32.mrb[0].mxu0
        %511 = vdwg.mxu0
        %v512 = vld [vmem:[#allocation8] sm:$0xff]
        %v513 = vld [vmem:[#allocation8 + $0x8] sm:$0xff]
        %v514 = vld [vmem:[#allocation8 + $0x10] sm:$0xff]
        %v515 = vld [vmem:[#allocation8 + $0x18] sm:$0xff]
        %516 = vmatprep.subr.mxu0 0.0
        %517 = vmatpush1.msra.mxu0 %v512
        %518 = vmatprep.subr.mxu0 0.0
        %519 = vmatpush1.msra.mxu0 %v513
        %520 = vmatprep.subr.mxu0 0.0
        %521 = vmatpush1.msra.mxu0 %v514
        %522 = vmatprep.subr.mxu0 0.0
        %523 = vmatpush1.msra.mxu0 %v515
        %524 = vmatprep.subr.mxu0 0.0
        %525 = vmatpush1.msra.mxu0 0.0
        %526 = vmatprep.subr.mxu0 0.0
        %527 = vmatpush1.msra.mxu0 0.0
        %528 = vmatprep.subr.mxu0 0.0
        %529 = vmatpush1.msra.mxu0 0.0
        %530 = vmatprep.subr.mxu0 0.0
        %531 = vmatpush1.msra.mxu0 0.0
        %532 = vmatprep.subr.mxu0 0.0
        %533 = vmatpush1.msra.mxu0 0.0
        %534 = vmatprep.subr.mxu0 0.0
        %535 = vmatpush1.msra.mxu0 0.0
        %536 = vmatprep.subr.mxu0 0.0
        %537 = vmatpush1.msra.mxu0 0.0
        %538 = vmatprep.subr.mxu0 0.0
        %539 = vmatpush1.msra.mxu0 0.0
        %540 = vmatprep.subr.mxu0 0.0
        %541 = vmatpush1.msra.mxu0 0.0
        %542 = vmatprep.subr.mxu0 0.0
        %543 = vmatpush1.msra.mxu0 0.0
        %544 = vmatprep.subr.mxu0 0.0
        %545 = vmatpush1.msra.mxu0 0.0
        %546 = vmatprep.subr.mxu0 0.0
        %547 = vmatpush1.msra.mxu0 0.0
        %548 = vmatprep.subr.mxu0 0.0
        %549 = vmatpush1.msra.mxu0 0.0
        %550 = vmatprep.subr.mxu0 0.0
        %551 = vmatpush1.msra.mxu0 0.0
        %552 = vmatprep.subr.mxu0 0.0
        %553 = vmatpush1.msra.mxu0 0.0
        %554 = vmatprep.subr.mxu0 0.0
        %555 = vmatpush1.msra.mxu0 0.0
        %556 = vmatprep.subr.mxu0 0.0
        %557 = vmatpush1.msra.mxu0 0.0
        %558 = vmatprep.subr.mxu0 0.0
        %559 = vmatpush1.msra.mxu0 0.0
        %560 = vmatprep.subr.mxu0 0.0
        %561 = vmatpush1.msra.mxu0 0.0
        %562 = vmatprep.subr.mxu0 0.0
        %563 = vmatpush1.msra.mxu0 0.0
        %564 = vmatprep.subr.mxu0 0.0
        %565 = vmatpush1.msra.mxu0 0.0
        %566 = vmatprep.subr.mxu0 0.0
        %567 = vmatpush1.msra.mxu0 0.0
        %568 = vmatprep.subr.mxu0 0.0
        %569 = vmatpush1.msra.mxu0 0.0
        %570 = vmatprep.subr.mxu0 0.0
        %571 = vmatpush1.msra.mxu0 0.0
        %572 = vmatprep.subr.mxu0 0.0
        %573 = vmatpush1.msra.mxu0 0.0
        %574 = vmatprep.subr.mxu0 0.0
        %575 = vmatpush1.msra.mxu0 0.0
        %576 = vmatprep.subr.mxu0 0.0
        %577 = vmatpush1.msra.mxu0 0.0
        %578 = vmatprep.subr.mxu0 0.0
        %579 = vmatpush1.msra.mxu0 0.0
        %580 = vmatprep.mubr.f32.mxu0 0.0
        %581 = vmatmul.mubr.f32.gmra.mrb[0].mxu0 %v359
        %v582 = vpop.f32.mrb[0].mxu0
        %v583 = vadd.f32 0.0, %v582
        %v584 = vpop.f32.mrb[0].mxu0
        %585 = vdwg.mxu0
        %587 = vrot.lane.b32.xlu0 %v428, 120
        %v588 = vpop.permute.xlu0 %587
        %590 = vrot.lane.b32.xlu0 %v428, 112
        %v591 = vpop.permute.xlu0 %590
        %593 = vrot.lane.b32.xlu0 %v428, 104
        %v594 = vpop.permute.xlu0 %593
        %v596 = vcombine.low %v428, %v591
        %v597 = vcombine.high %v428, %v591
        %v599 = vunpack.c.l.s4 1983009808
        %v600 = vunpack.c.0.s8 %v599
        %v601 = vlaneseq
        %v602 = vshrl.u32 %v601, 7
        %v603 = vsub.s32 %v600, %v602
        %v604 = vrot.slane %v596, %v603
        %v606 = vunpack.c.l.s4 1983009808
        %v607 = vunpack.c.0.s8 %v606
        %v608 = vlaneseq
        %v609 = vshrl.u32 %v608, 7
        %v610 = vsub.s32 %v607, %v609
        %v611 = vrot.slane %v597, %v610
        %v612 = vcombine.low %v588, %v594
        %v613 = vcombine.high %v588, %v594
        %v615 = vunpack.c.l.s4 1983009808
        %v616 = vunpack.c.0.s8 %v615
        %v617 = vlaneseq
        %v618 = vshrl.u32 %v617, 7
        %v619 = vsub.s32 %v616, %v618
        %v620 = vrot.slane %v612, %v619
        %v622 = vunpack.c.l.s4 1983009808
        %v623 = vunpack.c.0.s8 %v622
        %v624 = vlaneseq
        %v625 = vshrl.u32 %v624, 7
        %v626 = vsub.s32 %v623, %v625
        %v627 = vrot.slane %v613, %v626
        %v628 = vcombine.low %v604, %v620
        %v629 = vcombine.high %v604, %v620
        %v631 = vunpack.c.l.s4 1934713408
        %v632 = vunpack.c.0.s8 %v631
        %v633 = vlaneseq
        %v634 = vshrl.u32 %v633, 7
        %v635 = vsub.s32 %v632, %v634
        %v636 = vrot.slane %v628, %v635
        %v638 = vunpack.c.l.s4 1934713408
        %v639 = vunpack.c.0.s8 %v638
        %v640 = vlaneseq
        %v641 = vshrl.u32 %v640, 7
        %v642 = vsub.s32 %v639, %v641
        %v643 = vrot.slane %v629, %v642
        %v644 = vcombine.low %v611, %v627
        %v645 = vcombine.high %v611, %v627
        %v647 = vunpack.c.l.s4 1934713408
        %v648 = vunpack.c.0.s8 %v647
        %v649 = vlaneseq
        %v650 = vshrl.u32 %v649, 7
        %v651 = vsub.s32 %v648, %v650
        %v652 = vrot.slane %v644, %v651
        %v654 = vunpack.c.l.s4 1934713408
        %v655 = vunpack.c.0.s8 %v654
        %v656 = vlaneseq
        %v657 = vshrl.u32 %v656, 7
        %v658 = vsub.s32 %v655, %v657
        %v659 = vrot.slane %v645, %v658
        %v660 = vcombine.high %v636, 0.0
        %v661 = vcombine.high %v643, 0.0
        %v662 = vcombine.high %v652, 0.0
        %v663 = vcombine.high %v659, 0.0
        %v664 = vcombine.low %v636, %v643
        %v666 = vunpack.c.l.s4 1983009808
        %v667 = vunpack.c.0.s8 %v666
        %v668 = vlaneseq
        %v669 = vshrl.u32 %v668, 7
        %v670 = vsub.s32 %v667, %v669
        %v671 = vrot.slane %v664, %v670
        %v672 = vcombine.low %v660, %v661
        %v674 = vunpack.c.l.s4 1983009808
        %v675 = vunpack.c.0.s8 %v674
        %v676 = vlaneseq
        %v677 = vshrl.u32 %v676, 7
        %v678 = vsub.s32 %v675, %v677
        %v679 = vrot.slane %v672, %v678
        %v680 = vcombine.low %v652, %v659
        %v682 = vunpack.c.l.s4 1983009808
        %v683 = vunpack.c.0.s8 %v682
        %v684 = vlaneseq
        %v685 = vshrl.u32 %v684, 7
        %v686 = vsub.s32 %v683, %v685
        %v687 = vrot.slane %v680, %v686
        %v688 = vcombine.low %v662, %v663
        %v690 = vunpack.c.l.s4 1983009808
        %v691 = vunpack.c.0.s8 %v690
        %v692 = vlaneseq
        %v693 = vshrl.u32 %v692, 7
        %v694 = vsub.s32 %v691, %v693
        %v695 = vrot.slane %v688, %v694
        %v696 = vcombine.low %v671, %v679
        %v697 = vcombine.high %v671, %v679
        %v699 = vunpack.c.l.s4 1934713408
        %v700 = vunpack.c.0.s8 %v699
        %v701 = vlaneseq
        %v702 = vshrl.u32 %v701, 7
        %v703 = vsub.s32 %v700, %v702
        %v704 = vrot.slane %v696, %v703
        %v706 = vunpack.c.l.s4 1934713408
        %v707 = vunpack.c.0.s8 %v706
        %v708 = vlaneseq
        %v709 = vshrl.u32 %v708, 7
        %v710 = vsub.s32 %v707, %v709
        %v711 = vrot.slane %v697, %v710
        %v712 = vcombine.low %v687, %v695
        %v713 = vcombine.high %v687, %v695
        %v715 = vunpack.c.l.s4 1934713408
        %v716 = vunpack.c.0.s8 %v715
        %v717 = vlaneseq
        %v718 = vshrl.u32 %v717, 7
        %v719 = vsub.s32 %v716, %v718
        %v720 = vrot.slane %v712, %v719
        %v722 = vunpack.c.l.s4 1934713408
        %v723 = vunpack.c.0.s8 %v722
        %v724 = vlaneseq
        %v725 = vshrl.u32 %v724, 7
        %v726 = vsub.s32 %v723, %v725
        %v727 = vrot.slane %v713, %v726
        %v728 = vcombine.low %v704, %v720
        %v729 = vcombine.high %v704, %v720
        %v730 = vcombine.low %v711, %v727
        %v731 = vcombine.high %v711, %v727
        %733 = vrot.lane.b32.xlu0 %v509, 120
        %v734 = vpop.permute.xlu0 %733
        %736 = vrot.lane.b32.xlu0 %v509, 112
        %v737 = vpop.permute.xlu0 %736
        %739 = vrot.lane.b32.xlu0 %v509, 104
        %v740 = vpop.permute.xlu0 %739
        %v742 = vcombine.low %v509, %v737
        %v743 = vcombine.high %v509, %v737
        %v745 = vunpack.c.l.s4 1983009808
        %v746 = vunpack.c.0.s8 %v745
        %v747 = vlaneseq
        %v748 = vshrl.u32 %v747, 7
        %v749 = vsub.s32 %v746, %v748
        %v750 = vrot.slane %v742, %v749
        %v752 = vunpack.c.l.s4 1983009808
        %v753 = vunpack.c.0.s8 %v752
        %v754 = vlaneseq
        %v755 = vshrl.u32 %v754, 7
        %v756 = vsub.s32 %v753, %v755
        %v757 = vrot.slane %v743, %v756
        %v758 = vcombine.low %v734, %v740
        %v759 = vcombine.high %v734, %v740
        %v761 = vunpack.c.l.s4 1983009808
        %v762 = vunpack.c.0.s8 %v761
        %v763 = vlaneseq
        %v764 = vshrl.u32 %v763, 7
        %v765 = vsub.s32 %v762, %v764
        %v766 = vrot.slane %v758, %v765
        %v768 = vunpack.c.l.s4 1983009808
        %v769 = vunpack.c.0.s8 %v768
        %v770 = vlaneseq
        %v771 = vshrl.u32 %v770, 7
        %v772 = vsub.s32 %v769, %v771
        %v773 = vrot.slane %v759, %v772
        %v774 = vcombine.low %v750, %v766
        %v775 = vcombine.high %v750, %v766
        %v777 = vunpack.c.l.s4 1934713408
        %v778 = vunpack.c.0.s8 %v777
        %v779 = vlaneseq
        %v780 = vshrl.u32 %v779, 7
        %v781 = vsub.s32 %v778, %v780
        %v782 = vrot.slane %v774, %v781
        %v784 = vunpack.c.l.s4 1934713408
        %v785 = vunpack.c.0.s8 %v784
        %v786 = vlaneseq
        %v787 = vshrl.u32 %v786, 7
        %v788 = vsub.s32 %v785, %v787
        %v789 = vrot.slane %v775, %v788
        %v790 = vcombine.low %v757, %v773
        %v791 = vcombine.high %v757, %v773
        %v793 = vunpack.c.l.s4 1934713408
        %v794 = vunpack.c.0.s8 %v793
        %v795 = vlaneseq
        %v796 = vshrl.u32 %v795, 7
        %v797 = vsub.s32 %v794, %v796
        %v798 = vrot.slane %v790, %v797
        %v800 = vunpack.c.l.s4 1934713408
        %v801 = vunpack.c.0.s8 %v800
        %v802 = vlaneseq
        %v803 = vshrl.u32 %v802, 7
        %v804 = vsub.s32 %v801, %v803
        %v805 = vrot.slane %v791, %v804
        %v806 = vcombine.high %v782, 0.0
        %v807 = vcombine.high %v789, 0.0
        %v808 = vcombine.high %v798, 0.0
        %v809 = vcombine.high %v805, 0.0
        %v810 = vcombine.low %v782, %v789
        %v812 = vunpack.c.l.s4 1983009808
        %v813 = vunpack.c.0.s8 %v812
        %v814 = vlaneseq
        %v815 = vshrl.u32 %v814, 7
        %v816 = vsub.s32 %v813, %v815
        %v817 = vrot.slane %v810, %v816
        %v818 = vcombine.low %v806, %v807
        %v820 = vunpack.c.l.s4 1983009808
        %v821 = vunpack.c.0.s8 %v820
        %v822 = vlaneseq
        %v823 = vshrl.u32 %v822, 7
        %v824 = vsub.s32 %v821, %v823
        %v825 = vrot.slane %v818, %v824
        %v826 = vcombine.low %v798, %v805
        %v828 = vunpack.c.l.s4 1983009808
        %v829 = vunpack.c.0.s8 %v828
        %v830 = vlaneseq
        %v831 = vshrl.u32 %v830, 7
        %v832 = vsub.s32 %v829, %v831
        %v833 = vrot.slane %v826, %v832
        %v834 = vcombine.low %v808, %v809
        %v836 = vunpack.c.l.s4 1983009808
        %v837 = vunpack.c.0.s8 %v836
        %v838 = vlaneseq
        %v839 = vshrl.u32 %v838, 7
        %v840 = vsub.s32 %v837, %v839
        %v841 = vrot.slane %v834, %v840
        %v842 = vcombine.low %v817, %v825
        %v843 = vcombine.high %v817, %v825
        %v845 = vunpack.c.l.s4 1934713408
        %v846 = vunpack.c.0.s8 %v845
        %v847 = vlaneseq
        %v848 = vshrl.u32 %v847, 7
        %v849 = vsub.s32 %v846, %v848
        %v850 = vrot.slane %v842, %v849
        %v852 = vunpack.c.l.s4 1934713408
        %v853 = vunpack.c.0.s8 %v852
        %v854 = vlaneseq
        %v855 = vshrl.u32 %v854, 7
        %v856 = vsub.s32 %v853, %v855
        %v857 = vrot.slane %v843, %v856
        %v858 = vcombine.low %v833, %v841
        %v859 = vcombine.high %v833, %v841
        %v861 = vunpack.c.l.s4 1934713408
        %v862 = vunpack.c.0.s8 %v861
        %v863 = vlaneseq
        %v864 = vshrl.u32 %v863, 7
        %v865 = vsub.s32 %v862, %v864
        %v866 = vrot.slane %v858, %v865
        %v868 = vunpack.c.l.s4 1934713408
        %v869 = vunpack.c.0.s8 %v868
        %v870 = vlaneseq
        %v871 = vshrl.u32 %v870, 7
        %v872 = vsub.s32 %v869, %v871
        %v873 = vrot.slane %v859, %v872
        %v874 = vcombine.low %v850, %v866
        %v875 = vcombine.high %v850, %v866
        %v876 = vcombine.low %v857, %v873
        %v877 = vcombine.high %v857, %v873
        %879 = vrot.lane.b32.xlu0 %v583, 120
        %v880 = vpop.permute.xlu0 %879
        %882 = vrot.lane.b32.xlu0 %v583, 112
        %v883 = vpop.permute.xlu0 %882
        %885 = vrot.lane.b32.xlu0 %v583, 104
        %v886 = vpop.permute.xlu0 %885
        %v888 = vcombine.low %v583, %v883
        %v889 = vcombine.high %v583, %v883
        %v891 = vunpack.c.l.s4 1983009808
        %v892 = vunpack.c.0.s8 %v891
        %v893 = vlaneseq
        %v894 = vshrl.u32 %v893, 7
        %v895 = vsub.s32 %v892, %v894
        %v896 = vrot.slane %v888, %v895
        %v898 = vunpack.c.l.s4 1983009808
        %v899 = vunpack.c.0.s8 %v898
        %v900 = vlaneseq
        %v901 = vshrl.u32 %v900, 7
        %v902 = vsub.s32 %v899, %v901
        %v903 = vrot.slane %v889, %v902
        %v904 = vcombine.low %v880, %v886
        %v905 = vcombine.high %v880, %v886
        %v907 = vunpack.c.l.s4 1983009808
        %v908 = vunpack.c.0.s8 %v907
        %v909 = vlaneseq
        %v910 = vshrl.u32 %v909, 7
        %v911 = vsub.s32 %v908, %v910
        %v912 = vrot.slane %v904, %v911
        %v914 = vunpack.c.l.s4 1983009808
        %v915 = vunpack.c.0.s8 %v914
        %v916 = vlaneseq
        %v917 = vshrl.u32 %v916, 7
        %v918 = vsub.s32 %v915, %v917
        %v919 = vrot.slane %v905, %v918
        %v920 = vcombine.low %v896, %v912
        %v921 = vcombine.high %v896, %v912
        %v923 = vunpack.c.l.s4 1934713408
        %v924 = vunpack.c.0.s8 %v923
        %v925 = vlaneseq
        %v926 = vshrl.u32 %v925, 7
        %v927 = vsub.s32 %v924, %v926
        %v928 = vrot.slane %v920, %v927
        %v930 = vunpack.c.l.s4 1934713408
        %v931 = vunpack.c.0.s8 %v930
        %v932 = vlaneseq
        %v933 = vshrl.u32 %v932, 7
        %v934 = vsub.s32 %v931, %v933
        %v935 = vrot.slane %v921, %v934
        %v936 = vcombine.low %v903, %v919
        %v937 = vcombine.high %v903, %v919
        %v939 = vunpack.c.l.s4 1934713408
        %v940 = vunpack.c.0.s8 %v939
        %v941 = vlaneseq
        %v942 = vshrl.u32 %v941, 7
        %v943 = vsub.s32 %v940, %v942
        %v944 = vrot.slane %v936, %v943
        %v946 = vunpack.c.l.s4 1934713408
        %v947 = vunpack.c.0.s8 %v946
        %v948 = vlaneseq
        %v949 = vshrl.u32 %v948, 7
        %v950 = vsub.s32 %v947, %v949
        %v951 = vrot.slane %v937, %v950
        %v952 = vcombine.high %v928, 0.0
        %v953 = vcombine.high %v935, 0.0
        %v954 = vcombine.high %v944, 0.0
        %v955 = vcombine.high %v951, 0.0
        %v956 = vcombine.low %v928, %v935
        %v958 = vunpack.c.l.s4 1983009808
        %v959 = vunpack.c.0.s8 %v958
        %v960 = vlaneseq
        %v961 = vshrl.u32 %v960, 7
        %v962 = vsub.s32 %v959, %v961
        %v963 = vrot.slane %v956, %v962
        %v964 = vcombine.low %v952, %v953
        %v966 = vunpack.c.l.s4 1983009808
        %v967 = vunpack.c.0.s8 %v966
        %v968 = vlaneseq
        %v969 = vshrl.u32 %v968, 7
        %v970 = vsub.s32 %v967, %v969
        %v971 = vrot.slane %v964, %v970
        %v972 = vcombine.low %v944, %v951
        %v974 = vunpack.c.l.s4 1983009808
        %v975 = vunpack.c.0.s8 %v974
        %v976 = vlaneseq
        %v977 = vshrl.u32 %v976, 7
        %v978 = vsub.s32 %v975, %v977
        %v979 = vrot.slane %v972, %v978
        %v980 = vcombine.low %v954, %v955
        %v982 = vunpack.c.l.s4 1983009808
        %v983 = vunpack.c.0.s8 %v982
        %v984 = vlaneseq
        %v985 = vshrl.u32 %v984, 7
        %v986 = vsub.s32 %v983, %v985
        %v987 = vrot.slane %v980, %v986
        %v988 = vcombine.low %v963, %v971
        %v989 = vcombine.high %v963, %v971
        %v991 = vunpack.c.l.s4 1934713408
        %v992 = vunpack.c.0.s8 %v991
        %v993 = vlaneseq
        %v994 = vshrl.u32 %v993, 7
        %v995 = vsub.s32 %v992, %v994
        %v996 = vrot.slane %v988, %v995
        %v998 = vunpack.c.l.s4 1934713408
        %v999 = vunpack.c.0.s8 %v998
        %v1000 = vlaneseq
        %v1001 = vshrl.u32 %v1000, 7
        %v1002 = vsub.s32 %v999, %v1001
        %v1003 = vrot.slane %v989, %v1002
        %v1004 = vcombine.low %v979, %v987
        %v1005 = vcombine.high %v979, %v987
        %v1007 = vunpack.c.l.s4 1934713408
        %v1008 = vunpack.c.0.s8 %v1007
        %v1009 = vlaneseq
        %v1010 = vshrl.u32 %v1009, 7
        %v1011 = vsub.s32 %v1008, %v1010
        %v1012 = vrot.slane %v1004, %v1011
        %v1014 = vunpack.c.l.s4 1934713408
        %v1015 = vunpack.c.0.s8 %v1014
        %v1016 = vlaneseq
        %v1017 = vshrl.u32 %v1016, 7
        %v1018 = vsub.s32 %v1015, %v1017
        %v1019 = vrot.slane %v1005, %v1018
        %v1020 = vcombine.low %v996, %v1012
        %v1021 = vcombine.high %v996, %v1012
        %v1022 = vcombine.low %v1003, %v1019
        %v1023 = vcombine.high %v1003, %v1019
        %vm1024 = vcmask 64512
        %v1026 = vsel %vm1024, %v728, 0
        %v1029 = vsel %vm1024, %v874, 0
        %1031 = vmatprep.subr.mxu0 0.0
        %1032 = vmatpush1.xpose.msra.mxu0 %v1029
        %1033 = vmatprep.subr.mxu0 0.0
        %1034 = vmatpush1.xpose.msra.mxu0 0.0
        %1035 = vmatprep.subr.mxu0 0.0
        %1036 = vmatpush1.xpose.msra.mxu0 0.0
        %1037 = vmatprep.subr.mxu0 0.0
        %1038 = vmatpush1.xpose.msra.mxu0 0.0
        %1039 = vmatprep.subr.mxu0 0.0
        %1040 = vmatpush1.xpose.msra.mxu0 0.0
        %1041 = vmatprep.subr.mxu0 0.0
        %1042 = vmatpush1.xpose.msra.mxu0 0.0
        %1043 = vmatprep.subr.mxu0 0.0
        %1044 = vmatpush1.xpose.msra.mxu0 0.0
        %1045 = vmatprep.subr.mxu0 0.0
        %1046 = vmatpush1.xpose.msra.mxu0 0.0
        %1047 = vmatprep.subr.mxu0 0.0
        %1048 = vmatpush1.xpose.msra.mxu0 0.0
        %1049 = vmatprep.subr.mxu0 0.0
        %1050 = vmatpush1.xpose.msra.mxu0 0.0
        %1051 = vmatprep.subr.mxu0 0.0
        %1052 = vmatpush1.xpose.msra.mxu0 0.0
        %1053 = vmatprep.subr.mxu0 0.0
        %1054 = vmatpush1.xpose.msra.mxu0 0.0
        %1055 = vmatprep.subr.mxu0 0.0
        %1056 = vmatpush1.xpose.msra.mxu0 0.0
        %1057 = vmatprep.subr.mxu0 0.0
        %1058 = vmatpush1.xpose.msra.mxu0 0.0
        %1059 = vmatprep.subr.mxu0 0.0
        %1060 = vmatpush1.xpose.msra.mxu0 0.0
        %1061 = vmatprep.subr.mxu0 0.0
        %1062 = vmatpush1.xpose.msra.mxu0 0.0
        %1063 = vmatprep.subr.mxu0 0.0
        %1064 = vmatpush1.xpose.msra.mxu0 0.0
        %1065 = vmatprep.subr.mxu0 0.0
        %1066 = vmatpush1.xpose.msra.mxu0 0.0
        %1067 = vmatprep.subr.mxu0 0.0
        %1068 = vmatpush1.xpose.msra.mxu0 0.0
        %1069 = vmatprep.subr.mxu0 0.0
        %1070 = vmatpush1.xpose.msra.mxu0 0.0
        %1071 = vmatprep.subr.mxu0 0.0
        %1072 = vmatpush1.xpose.msra.mxu0 0.0
        %1073 = vmatprep.subr.mxu0 0.0
        %1074 = vmatpush1.xpose.msra.mxu0 0.0
        %1075 = vmatprep.subr.mxu0 0.0
        %1076 = vmatpush1.xpose.msra.mxu0 0.0
        %1077 = vmatprep.subr.mxu0 0.0
        %1078 = vmatpush1.xpose.msra.mxu0 0.0
        %1079 = vmatprep.subr.mxu0 0.0
        %1080 = vmatpush1.xpose.msra.mxu0 0.0
        %1081 = vmatprep.subr.mxu0 0.0
        %1082 = vmatpush1.xpose.msra.mxu0 0.0
        %1083 = vmatprep.subr.mxu0 0.0
        %1084 = vmatpush1.xpose.msra.mxu0 0.0
        %1085 = vmatprep.subr.mxu0 0.0
        %1086 = vmatpush1.xpose.msra.mxu0 0.0
        %1087 = vmatprep.subr.mxu0 0.0
        %1088 = vmatpush1.xpose.msra.mxu0 0.0
        %1089 = vmatprep.subr.mxu0 0.0
        %1090 = vmatpush1.xpose.msra.mxu0 0.0
        %1091 = vmatprep.subr.mxu0 0.0
        %1092 = vmatpush1.xpose.msra.mxu0 0.0
        %1093 = vmatprep.subr.mxu0 0.0
        %1094 = vmatpush1.xpose.msra.mxu0 0.0
        %1095 = vmatprep.mubr.f32.mxu0 0.0
        %1096 = vmatmul.mubr.f32.gmra.mrb[0].mxu0 %v1026
        %v1097 = vpop.f32.mrb[0].mxu0
        %v1098 = vadd.f32 0.0, %v1097
        %v1099 = vpop.f32.mrb[0].mxu0
        %1100 = vdwg.mxu0
        %v1102 = vsel %vm1024, %v729, 0
        %v1105 = vsel %vm1024, %v875, 0
        %1107 = vmatprep.subr.mxu0 0.0
        %1108 = vmatpush1.xpose.msra.mxu0 %v1105
        %1109 = vmatprep.subr.mxu0 0.0
        %1110 = vmatpush1.xpose.msra.mxu0 0.0
        %1111 = vmatprep.subr.mxu0 0.0
        %1112 = vmatpush1.xpose.msra.mxu0 0.0
        %1113 = vmatprep.subr.mxu0 0.0
        %1114 = vmatpush1.xpose.msra.mxu0 0.0
        %1115 = vmatprep.subr.mxu0 0.0
        %1116 = vmatpush1.xpose.msra.mxu0 0.0
        %1117 = vmatprep.subr.mxu0 0.0
        %1118 = vmatpush1.xpose.msra.mxu0 0.0
        %1119 = vmatprep.subr.mxu0 0.0
        %1120 = vmatpush1.xpose.msra.mxu0 0.0
        %1121 = vmatprep.subr.mxu0 0.0
        %1122 = vmatpush1.xpose.msra.mxu0 0.0
        %1123 = vmatprep.subr.mxu0 0.0
        %1124 = vmatpush1.xpose.msra.mxu0 0.0
        %1125 = vmatprep.subr.mxu0 0.0
        %1126 = vmatpush1.xpose.msra.mxu0 0.0
        %1127 = vmatprep.subr.mxu0 0.0
        %1128 = vmatpush1.xpose.msra.mxu0 0.0
        %1129 = vmatprep.subr.mxu0 0.0
        %1130 = vmatpush1.xpose.msra.mxu0 0.0
        %1131 = vmatprep.subr.mxu0 0.0
        %1132 = vmatpush1.xpose.msra.mxu0 0.0
        %1133 = vmatprep.subr.mxu0 0.0
        %1134 = vmatpush1.xpose.msra.mxu0 0.0
        %1135 = vmatprep.subr.mxu0 0.0
        %1136 = vmatpush1.xpose.msra.mxu0 0.0
        %1137 = vmatprep.subr.mxu0 0.0
        %1138 = vmatpush1.xpose.msra.mxu0 0.0
        %1139 = vmatprep.subr.mxu0 0.0
        %1140 = vmatpush1.xpose.msra.mxu0 0.0
        %1141 = vmatprep.subr.mxu0 0.0
        %1142 = vmatpush1.xpose.msra.mxu0 0.0
        %1143 = vmatprep.subr.mxu0 0.0
        %1144 = vmatpush1.xpose.msra.mxu0 0.0
        %1145 = vmatprep.subr.mxu0 0.0
        %1146 = vmatpush1.xpose.msra.mxu0 0.0
        %1147 = vmatprep.subr.mxu0 0.0
        %1148 = vmatpush1.xpose.msra.mxu0 0.0
        %1149 = vmatprep.subr.mxu0 0.0
        %1150 = vmatpush1.xpose.msra.mxu0 0.0
        %1151 = vmatprep.subr.mxu0 0.0
        %1152 = vmatpush1.xpose.msra.mxu0 0.0
        %1153 = vmatprep.subr.mxu0 0.0
        %1154 = vmatpush1.xpose.msra.mxu0 0.0
        %1155 = vmatprep.subr.mxu0 0.0
        %1156 = vmatpush1.xpose.msra.mxu0 0.0
        %1157 = vmatprep.subr.mxu0 0.0
        %1158 = vmatpush1.xpose.msra.mxu0 0.0
        %1159 = vmatprep.subr.mxu0 0.0
        %1160 = vmatpush1.xpose.msra.mxu0 0.0
        %1161 = vmatprep.subr.mxu0 0.0
        %1162 = vmatpush1.xpose.msra.mxu0 0.0
        %1163 = vmatprep.subr.mxu0 0.0
        %1164 = vmatpush1.xpose.msra.mxu0 0.0
        %1165 = vmatprep.subr.mxu0 0.0
        %1166 = vmatpush1.xpose.msra.mxu0 0.0
        %1167 = vmatprep.subr.mxu0 0.0
        %1168 = vmatpush1.xpose.msra.mxu0 0.0
        %1169 = vmatprep.subr.mxu0 0.0
        %1170 = vmatpush1.xpose.msra.mxu0 0.0
        %1171 = vmatprep.mubr.f32.mxu0 0.0
        %1172 = vmatmul.mubr.f32.gmra.mrb[0].mxu0 %v1102
        %v1173 = vpop.f32.mrb[0].mxu0
        %v1174 = vadd.f32 0.0, %v1173
        %v1175 = vpop.f32.mrb[0].mxu0
        %1176 = vdwg.mxu0
        %v1178 = vsel %vm1024, %v730, 0
        %v1181 = vsel %vm1024, %v876, 0
        %1183 = vmatprep.subr.mxu0 0.0
        %1184 = vmatpush1.xpose.msra.mxu0 %v1181
        %1185 = vmatprep.subr.mxu0 0.0
        %1186 = vmatpush1.xpose.msra.mxu0 0.0
        %1187 = vmatprep.subr.mxu0 0.0
        %1188 = vmatpush1.xpose.msra.mxu0 0.0
        %1189 = vmatprep.subr.mxu0 0.0
        %1190 = vmatpush1.xpose.msra.mxu0 0.0
        %1191 = vmatprep.subr.mxu0 0.0
        %1192 = vmatpush1.xpose.msra.mxu0 0.0
        %1193 = vmatprep.subr.mxu0 0.0
        %1194 = vmatpush1.xpose.msra.mxu0 0.0
        %1195 = vmatprep.subr.mxu0 0.0
        %1196 = vmatpush1.xpose.msra.mxu0 0.0
        %1197 = vmatprep.subr.mxu0 0.0
        %1198 = vmatpush1.xpose.msra.mxu0 0.0
        %1199 = vmatprep.subr.mxu0 0.0
        %1200 = vmatpush1.xpose.msra.mxu0 0.0
        %1201 = vmatprep.subr.mxu0 0.0
        %1202 = vmatpush1.xpose.msra.mxu0 0.0
        %1203 = vmatprep.subr.mxu0 0.0
        %1204 = vmatpush1.xpose.msra.mxu0 0.0
        %1205 = vmatprep.subr.mxu0 0.0
        %1206 = vmatpush1.xpose.msra.mxu0 0.0
        %1207 = vmatprep.subr.mxu0 0.0
        %1208 = vmatpush1.xpose.msra.mxu0 0.0
        %1209 = vmatprep.subr.mxu0 0.0
        %1210 = vmatpush1.xpose.msra.mxu0 0.0
        %1211 = vmatprep.subr.mxu0 0.0
        %1212 = vmatpush1.xpose.msra.mxu0 0.0
        %1213 = vmatprep.subr.mxu0 0.0
        %1214 = vmatpush1.xpose.msra.mxu0 0.0
        %1215 = vmatprep.subr.mxu0 0.0
        %1216 = vmatpush1.xpose.msra.mxu0 0.0
        %1217 = vmatprep.subr.mxu0 0.0
        %1218 = vmatpush1.xpose.msra.mxu0 0.0
        %1219 = vmatprep.subr.mxu0 0.0
        %1220 = vmatpush1.xpose.msra.mxu0 0.0
        %1221 = vmatprep.subr.mxu0 0.0
        %1222 = vmatpush1.xpose.msra.mxu0 0.0
        %1223 = vmatprep.subr.mxu0 0.0
        %1224 = vmatpush1.xpose.msra.mxu0 0.0
        %1225 = vmatprep.subr.mxu0 0.0
        %1226 = vmatpush1.xpose.msra.mxu0 0.0
        %1227 = vmatprep.subr.mxu0 0.0
        %1228 = vmatpush1.xpose.msra.mxu0 0.0
        %1229 = vmatprep.subr.mxu0 0.0
        %1230 = vmatpush1.xpose.msra.mxu0 0.0
        %1231 = vmatprep.subr.mxu0 0.0
        %1232 = vmatpush1.xpose.msra.mxu0 0.0
        %1233 = vmatprep.subr.mxu0 0.0
        %1234 = vmatpush1.xpose.msra.mxu0 0.0
        %1235 = vmatprep.subr.mxu0 0.0
        %1236 = vmatpush1.xpose.msra.mxu0 0.0
        %1237 = vmatprep.subr.mxu0 0.0
        %1238 = vmatpush1.xpose.msra.mxu0 0.0
        %1239 = vmatprep.subr.mxu0 0.0
        %1240 = vmatpush1.xpose.msra.mxu0 0.0
        %1241 = vmatprep.subr.mxu0 0.0
        %1242 = vmatpush1.xpose.msra.mxu0 0.0
        %1243 = vmatprep.subr.mxu0 0.0
        %1244 = vmatpush1.xpose.msra.mxu0 0.0
        %1245 = vmatprep.subr.mxu0 0.0
        %1246 = vmatpush1.xpose.msra.mxu0 0.0
        %1247 = vmatprep.mubr.f32.mxu0 0.0
        %1248 = vmatmul.mubr.f32.gmra.mrb[0].mxu0 %v1178
        %v1249 = vpop.f32.mrb[0].mxu0
        %v1250 = vadd.f32 0.0, %v1249
        %v1251 = vpop.f32.mrb[0].mxu0
        %1252 = vdwg.mxu0
        %v1254 = vsel %vm1024, %v731, 0
        %v1257 = vsel %vm1024, %v877, 0
        %1259 = vmatprep.subr.mxu0 0.0
        %1260 = vmatpush1.xpose.msra.mxu0 %v1257
        %1261 = vmatprep.subr.mxu0 0.0
        %1262 = vmatpush1.xpose.msra.mxu0 0.0
        %1263 = vmatprep.subr.mxu0 0.0
        %1264 = vmatpush1.xpose.msra.mxu0 0.0
        %1265 = vmatprep.subr.mxu0 0.0
        %1266 = vmatpush1.xpose.msra.mxu0 0.0
        %1267 = vmatprep.subr.mxu0 0.0
        %1268 = vmatpush1.xpose.msra.mxu0 0.0
        %1269 = vmatprep.subr.mxu0 0.0
        %1270 = vmatpush1.xpose.msra.mxu0 0.0
        %1271 = vmatprep.subr.mxu0 0.0
        %1272 = vmatpush1.xpose.msra.mxu0 0.0
        %1273 = vmatprep.subr.mxu0 0.0
        %1274 = vmatpush1.xpose.msra.mxu0 0.0
        %1275 = vmatprep.subr.mxu0 0.0
        %1276 = vmatpush1.xpose.msra.mxu0 0.0
        %1277 = vmatprep.subr.mxu0 0.0
        %1278 = vmatpush1.xpose.msra.mxu0 0.0
        %1279 = vmatprep.subr.mxu0 0.0
        %1280 = vmatpush1.xpose.msra.mxu0 0.0
        %1281 = vmatprep.subr.mxu0 0.0
        %1282 = vmatpush1.xpose.msra.mxu0 0.0
        %1283 = vmatprep.subr.mxu0 0.0
        %1284 = vmatpush1.xpose.msra.mxu0 0.0
        %1285 = vmatprep.subr.mxu0 0.0
        %1286 = vmatpush1.xpose.msra.mxu0 0.0
        %1287 = vmatprep.subr.mxu0 0.0
        %1288 = vmatpush1.xpose.msra.mxu0 0.0
        %1289 = vmatprep.subr.mxu0 0.0
        %1290 = vmatpush1.xpose.msra.mxu0 0.0
        %1291 = vmatprep.subr.mxu0 0.0
        %1292 = vmatpush1.xpose.msra.mxu0 0.0
        %1293 = vmatprep.subr.mxu0 0.0
        %1294 = vmatpush1.xpose.msra.mxu0 0.0
        %1295 = vmatprep.subr.mxu0 0.0
        %1296 = vmatpush1.xpose.msra.mxu0 0.0
        %1297 = vmatprep.subr.mxu0 0.0
        %1298 = vmatpush1.xpose.msra.mxu0 0.0
        %1299 = vmatprep.subr.mxu0 0.0
        %1300 = vmatpush1.xpose.msra.mxu0 0.0
        %1301 = vmatprep.subr.mxu0 0.0
        %1302 = vmatpush1.xpose.msra.mxu0 0.0
        %1303 = vmatprep.subr.mxu0 0.0
        %1304 = vmatpush1.xpose.msra.mxu0 0.0
        %1305 = vmatprep.subr.mxu0 0.0
        %1306 = vmatpush1.xpose.msra.mxu0 0.0
        %1307 = vmatprep.subr.mxu0 0.0
        %1308 = vmatpush1.xpose.msra.mxu0 0.0
        %1309 = vmatprep.subr.mxu0 0.0
        %1310 = vmatpush1.xpose.msra.mxu0 0.0
        %1311 = vmatprep.subr.mxu0 0.0
        %1312 = vmatpush1.xpose.msra.mxu0 0.0
        %1313 = vmatprep.subr.mxu0 0.0
        %1314 = vmatpush1.xpose.msra.mxu0 0.0
        %1315 = vmatprep.subr.mxu0 0.0
        %1316 = vmatpush1.xpose.msra.mxu0 0.0
        %1317 = vmatprep.subr.mxu0 0.0
        %1318 = vmatpush1.xpose.msra.mxu0 0.0
        %1319 = vmatprep.subr.mxu0 0.0
        %1320 = vmatpush1.xpose.msra.mxu0 0.0
        %1321 = vmatprep.subr.mxu0 0.0
        %1322 = vmatpush1.xpose.msra.mxu0 0.0
        %1323 = vmatprep.mubr.f32.mxu0 0.0
        %1324 = vmatmul.mubr.f32.gmra.mrb[0].mxu0 %v1254
        %v1325 = vpop.f32.mrb[0].mxu0
        %v1326 = vadd.f32 0.0, %v1325
        %v1327 = vpop.f32.mrb[0].mxu0
        %1328 = vdwg.mxu0
        %v1329 = vsel %vm1024, %v1098, -inf
        %1330 = vmax.xlane.f32.xlu0 %v1329
        %v1331 = vpop.xlane.xlu0 %1330
        %v1332 = vsel %vm1024, %v1174, -inf
        %1333 = vmax.xlane.f32.xlu0 %v1332
        %v1334 = vpop.xlane.xlu0 %1333
        %v1335 = vsel %vm1024, %v1250, -inf
        %1336 = vmax.xlane.f32.xlu0 %v1335
        %v1337 = vpop.xlane.xlu0 %1336
        %v1338 = vsel %vm1024, %v1326, -inf
        %1339 = vmax.xlane.f32.xlu0 %v1338
        %v1340 = vpop.xlane.xlu0 %1339
        %v1341 = vsub.f32 %v1098, %v1331
        %v1342 = vsub.f32 %v1174, %v1334
        %v1343 = vsub.f32 %v1250, %v1337
        %v1344 = vsub.f32 %v1326, %v1340
        %v1345 = vmul.f32 %v1341, 1.442695
        %v1346 = vpow.pop %v1345
        %v1347 = vmul.f32 %v1342, 1.442695
        %v1348 = vpow.pop %v1347
        %v1349 = vmul.f32 %v1343, 1.442695
        %v1350 = vpow.pop %v1349
        %v1351 = vmul.f32 %v1344, 1.442695
        %v1352 = vpow.pop %v1351
        %v1353 = vsel %vm1024, %v1346, 0.0
        %1354 = vadd.xlane.f32.xlu0 %v1353
        %v1355 = vpop.xlane.xlu0 %1354
        %v1356 = vsel %vm1024, %v1348, 0.0
        %1357 = vadd.xlane.f32.xlu0 %v1356
        %v1358 = vpop.xlane.xlu0 %1357
        %v1359 = vsel %vm1024, %v1350, 0.0
        %1360 = vadd.xlane.f32.xlu0 %v1359
        %v1361 = vpop.xlane.xlu0 %1360
        %v1362 = vsel %vm1024, %v1352, 0.0
        %1363 = vadd.xlane.f32.xlu0 %v1362
        %v1364 = vpop.xlane.xlu0 %1363
        %v1365 = vrcp.pop %v1355
        %v1366 = vmul.f32 1.0, %v1365
        %v1367 = vrcp.pop %v1358
        %v1368 = vmul.f32 1.0, %v1367
        %v1369 = vrcp.pop %v1361
        %v1370 = vmul.f32 1.0, %v1369
        %v1371 = vrcp.pop %v1364
        %v1372 = vmul.f32 1.0, %v1371
        %v1374 = vsel %vm1024, %v1346, 0
        %1376 = vmatprep.subr.mxu0 0.0
        %1377 = vmatpush1.msra.mxu0 %v1020
        %1378 = vmatprep.subr.mxu0 0.0
        %1379 = vmatpush1.msra.mxu0 0.0
        %1380 = vmatprep.subr.mxu0 0.0
        %1381 = vmatpush1.msra.mxu0 0.0
        %1382 = vmatprep.subr.mxu0 0.0
        %1383 = vmatpush1.msra.mxu0 0.0
        %1384 = vmatprep.subr.mxu0 0.0
        %1385 = vmatpush1.msra.mxu0 0.0
        %1386 = vmatprep.subr.mxu0 0.0
        %1387 = vmatpush1.msra.mxu0 0.0
        %1388 = vmatprep.subr.mxu0 0.0
        %1389 = vmatpush1.msra.mxu0 0.0
        %1390 = vmatprep.subr.mxu0 0.0
        %1391 = vmatpush1.msra.mxu0 0.0
        %1392 = vmatprep.subr.mxu0 0.0
        %1393 = vmatpush1.msra.mxu0 0.0
        %1394 = vmatprep.subr.mxu0 0.0
        %1395 = vmatpush1.msra.mxu0 0.0
        %1396 = vmatprep.subr.mxu0 0.0
        %1397 = vmatpush1.msra.mxu0 0.0
        %1398 = vmatprep.subr.mxu0 0.0
        %1399 = vmatpush1.msra.mxu0 0.0
        %1400 = vmatprep.subr.mxu0 0.0
        %1401 = vmatpush1.msra.mxu0 0.0
        %1402 = vmatprep.subr.mxu0 0.0
        %1403 = vmatpush1.msra.mxu0 0.0
        %1404 = vmatprep.subr.mxu0 0.0
        %1405 = vmatpush1.msra.mxu0 0.0
        %1406 = vmatprep.subr.mxu0 0.0
        %1407 = vmatpush1.msra.mxu0 0.0
        %1408 = vmatprep.subr.mxu0 0.0
        %1409 = vmatpush1.msra.mxu0 0.0
        %1410 = vmatprep.subr.mxu0 0.0
        %1411 = vmatpush1.msra.mxu0 0.0
        %1412 = vmatprep.subr.mxu0 0.0
        %1413 = vmatpush1.msra.mxu0 0.0
        %1414 = vmatprep.subr.mxu0 0.0
        %1415 = vmatpush1.msra.mxu0 0.0
        %1416 = vmatprep.subr.mxu0 0.0
        %1417 = vmatpush1.msra.mxu0 0.0
        %1418 = vmatprep.subr.mxu0 0.0
        %1419 = vmatpush1.msra.mxu0 0.0
        %1420 = vmatprep.subr.mxu0 0.0
        %1421 = vmatpush1.msra.mxu0 0.0
        %1422 = vmatprep.subr.mxu0 0.0
        %1423 = vmatpush1.msra.mxu0 0.0
        %1424 = vmatprep.subr.mxu0 0.0
        %1425 = vmatpush1.msra.mxu0 0.0
        %1426 = vmatprep.subr.mxu0 0.0
        %1427 = vmatpush1.msra.mxu0 0.0
        %1428 = vmatprep.subr.mxu0 0.0
        %1429 = vmatpush1.msra.mxu0 0.0
        %1430 = vmatprep.subr.mxu0 0.0
        %1431 = vmatpush1.msra.mxu0 0.0
        %1432 = vmatprep.subr.mxu0 0.0
        %1433 = vmatpush1.msra.mxu0 0.0
        %1434 = vmatprep.subr.mxu0 0.0
        %1435 = vmatpush1.msra.mxu0 0.0
        %1436 = vmatprep.subr.mxu0 0.0
        %1437 = vmatpush1.msra.mxu0 0.0
        %1438 = vmatprep.subr.mxu0 0.0
        %1439 = vmatpush1.msra.mxu0 0.0
        %1440 = vmatprep.mubr.f32.mxu0 0.0
        %1441 = vmatmul.mubr.f32.gmra.mrb[0].mxu0 %v1374
        %v1442 = vpop.f32.mrb[0].mxu0
        %v1443 = vadd.f32 0.0, %v1442
        %v1444 = vpop.f32.mrb[0].mxu0
        %1445 = vdwg.mxu0
        %v1447 = vsel %vm1024, %v1348, 0
        %1449 = vmatprep.subr.mxu0 0.0
        %1450 = vmatpush1.msra.mxu0 %v1021
        %1451 = vmatprep.subr.mxu0 0.0
        %1452 = vmatpush1.msra.mxu0 0.0
        %1453 = vmatprep.subr.mxu0 0.0
        %1454 = vmatpush1.msra.mxu0 0.0
        %1455 = vmatprep.subr.mxu0 0.0
        %1456 = vmatpush1.msra.mxu0 0.0
        %1457 = vmatprep.subr.mxu0 0.0
        %1458 = vmatpush1.msra.mxu0 0.0
        %1459 = vmatprep.subr.mxu0 0.0
        %1460 = vmatpush1.msra.mxu0 0.0
        %1461 = vmatprep.subr.mxu0 0.0
        %1462 = vmatpush1.msra.mxu0 0.0
        %1463 = vmatprep.subr.mxu0 0.0
        %1464 = vmatpush1.msra.mxu0 0.0
        %1465 = vmatprep.subr.mxu0 0.0
        %1466 = vmatpush1.msra.mxu0 0.0
        %1467 = vmatprep.subr.mxu0 0.0
        %1468 = vmatpush1.msra.mxu0 0.0
        %1469 = vmatprep.subr.mxu0 0.0
        %1470 = vmatpush1.msra.mxu0 0.0
        %1471 = vmatprep.subr.mxu0 0.0
        %1472 = vmatpush1.msra.mxu0 0.0
        %1473 = vmatprep.subr.mxu0 0.0
        %1474 = vmatpush1.msra.mxu0 0.0
        %1475 = vmatprep.subr.mxu0 0.0
        %1476 = vmatpush1.msra.mxu0 0.0
        %1477 = vmatprep.subr.mxu0 0.0
        %1478 = vmatpush1.msra.mxu0 0.0
        %1479 = vmatprep.subr.mxu0 0.0
        %1480 = vmatpush1.msra.mxu0 0.0
        %1481 = vmatprep.subr.mxu0 0.0
        %1482 = vmatpush1.msra.mxu0 0.0
        %1483 = vmatprep.subr.mxu0 0.0
        %1484 = vmatpush1.msra.mxu0 0.0
        %1485 = vmatprep.subr.mxu0 0.0
        %1486 = vmatpush1.msra.mxu0 0.0
        %1487 = vmatprep.subr.mxu0 0.0
        %1488 = vmatpush1.msra.mxu0 0.0
        %1489 = vmatprep.subr.mxu0 0.0
        %1490 = vmatpush1.msra.mxu0 0.0
        %1491 = vmatprep.subr.mxu0 0.0
        %1492 = vmatpush1.msra.mxu0 0.0
        %1493 = vmatprep.subr.mxu0 0.0
        %1494 = vmatpush1.msra.mxu0 0.0
        %1495 = vmatprep.subr.mxu0 0.0
        %1496 = vmatpush1.msra.mxu0 0.0
        %1497 = vmatprep.subr.mxu0 0.0
        %1498 = vmatpush1.msra.mxu0 0.0
        %1499 = vmatprep.subr.mxu0 0.0
        %1500 = vmatpush1.msra.mxu0 0.0
        %1501 = vmatprep.subr.mxu0 0.0
        %1502 = vmatpush1.msra.mxu0 0.0
        %1503 = vmatprep.subr.mxu0 0.0
        %1504 = vmatpush1.msra.mxu0 0.0
        %1505 = vmatprep.subr.mxu0 0.0
        %1506 = vmatpush1.msra.mxu0 0.0
        %1507 = vmatprep.subr.mxu0 0.0
        %1508 = vmatpush1.msra.mxu0 0.0
        %1509 = vmatprep.subr.mxu0 0.0
        %1510 = vmatpush1.msra.mxu0 0.0
        %1511 = vmatprep.subr.mxu0 0.0
        %1512 = vmatpush1.msra.mxu0 0.0
        %1513 = vmatprep.mubr.f32.mxu0 0.0
        %1514 = vmatmul.mubr.f32.gmra.mrb[0].mxu0 %v1447
        %v1515 = vpop.f32.mrb[0].mxu0
        %v1516 = vadd.f32 0.0, %v1515
        %v1517 = vpop.f32.mrb[0].mxu0
        %1518 = vdwg.mxu0
        %v1520 = vsel %vm1024, %v1350, 0
        %1522 = vmatprep.subr.mxu0 0.0
        %1523 = vmatpush1.msra.mxu0 %v1022
        %1524 = vmatprep.subr.mxu0 0.0
        %1525 = vmatpush1.msra.mxu0 0.0
        %1526 = vmatprep.subr.mxu0 0.0
        %1527 = vmatpush1.msra.mxu0 0.0
        %1528 = vmatprep.subr.mxu0 0.0
        %1529 = vmatpush1.msra.mxu0 0.0
        %1530 = vmatprep.subr.mxu0 0.0
        %1531 = vmatpush1.msra.mxu0 0.0
        %1532 = vmatprep.subr.mxu0 0.0
        %1533 = vmatpush1.msra.mxu0 0.0
        %1534 = vmatprep.subr.mxu0 0.0
        %1535 = vmatpush1.msra.mxu0 0.0
        %1536 = vmatprep.subr.mxu0 0.0
        %1537 = vmatpush1.msra.mxu0 0.0
        %1538 = vmatprep.subr.mxu0 0.0
        %1539 = vmatpush1.msra.mxu0 0.0
        %1540 = vmatprep.subr.mxu0 0.0
        %1541 = vmatpush1.msra.mxu0 0.0
        %1542 = vmatprep.subr.mxu0 0.0
        %1543 = vmatpush1.msra.mxu0 0.0
        %1544 = vmatprep.subr.mxu0 0.0
        %1545 = vmatpush1.msra.mxu0 0.0
        %1546 = vmatprep.subr.mxu0 0.0
        %1547 = vmatpush1.msra.mxu0 0.0
        %1548 = vmatprep.subr.mxu0 0.0
        %1549 = vmatpush1.msra.mxu0 0.0
        %1550 = vmatprep.subr.mxu0 0.0
        %1551 = vmatpush1.msra.mxu0 0.0
        %1552 = vmatprep.subr.mxu0 0.0
        %1553 = vmatpush1.msra.mxu0 0.0
        %1554 = vmatprep.subr.mxu0 0.0
        %1555 = vmatpush1.msra.mxu0 0.0
        %1556 = vmatprep.subr.mxu0 0.0
        %1557 = vmatpush1.msra.mxu0 0.0
        %1558 = vmatprep.subr.mxu0 0.0
        %1559 = vmatpush1.msra.mxu0 0.0
        %1560 = vmatprep.subr.mxu0 0.0
        %1561 = vmatpush1.msra.mxu0 0.0
        %1562 = vmatprep.subr.mxu0 0.0
        %1563 = vmatpush1.msra.mxu0 0.0
        %1564 = vmatprep.subr.mxu0 0.0
        %1565 = vmatpush1.msra.mxu0 0.0
        %1566 = vmatprep.subr.mxu0 0.0
        %1567 = vmatpush1.msra.mxu0 0.0
        %1568 = vmatprep.subr.mxu0 0.0
        %1569 = vmatpush1.msra.mxu0 0.0
        %1570 = vmatprep.subr.mxu0 0.0
        %1571 = vmatpush1.msra.mxu0 0.0
        %1572 = vmatprep.subr.mxu0 0.0
        %1573 = vmatpush1.msra.mxu0 0.0
        %1574 = vmatprep.subr.mxu0 0.0
        %1575 = vmatpush1.msra.mxu0 0.0
        %1576 = vmatprep.subr.mxu0 0.0
        %1577 = vmatpush1.msra.mxu0 0.0
        %1578 = vmatprep.subr.mxu0 0.0
        %1579 = vmatpush1.msra.mxu0 0.0
        %1580 = vmatprep.subr.mxu0 0.0
        %1581 = vmatpush1.msra.mxu0 0.0
        %1582 = vmatprep.subr.mxu0 0.0
        %1583 = vmatpush1.msra.mxu0 0.0
        %1584 = vmatprep.subr.mxu0 0.0
        %1585 = vmatpush1.msra.mxu0 0.0
        %1586 = vmatprep.mubr.f32.mxu0 0.0
        %1587 = vmatmul.mubr.f32.gmra.mrb[0].mxu0 %v1520
        %v1588 = vpop.f32.mrb[0].mxu0
        %v1589 = vadd.f32 0.0, %v1588
        %v1590 = vpop.f32.mrb[0].mxu0
        %1591 = vdwg.mxu0
        %v1593 = vsel %vm1024, %v1352, 0
        %1595 = vmatprep.subr.mxu0 0.0
        %1596 = vmatpush1.msra.mxu0 %v1023
        %1597 = vmatprep.subr.mxu0 0.0
        %1598 = vmatpush1.msra.mxu0 0.0
        %1599 = vmatprep.subr.mxu0 0.0
        %1600 = vmatpush1.msra.mxu0 0.0
        %1601 = vmatprep.subr.mxu0 0.0
        %1602 = vmatpush1.msra.mxu0 0.0
        %1603 = vmatprep.subr.mxu0 0.0
        %1604 = vmatpush1.msra.mxu0 0.0
        %1605 = vmatprep.subr.mxu0 0.0
        %1606 = vmatpush1.msra.mxu0 0.0
        %1607 = vmatprep.subr.mxu0 0.0
        %1608 = vmatpush1.msra.mxu0 0.0
        %1609 = vmatprep.subr.mxu0 0.0
        %1610 = vmatpush1.msra.mxu0 0.0
        %1611 = vmatprep.subr.mxu0 0.0
        %1612 = vmatpush1.msra.mxu0 0.0
        %1613 = vmatprep.subr.mxu0 0.0
        %1614 = vmatpush1.msra.mxu0 0.0
        %1615 = vmatprep.subr.mxu0 0.0
        %1616 = vmatpush1.msra.mxu0 0.0
        %1617 = vmatprep.subr.mxu0 0.0
        %1618 = vmatpush1.msra.mxu0 0.0
        %1619 = vmatprep.subr.mxu0 0.0
        %1620 = vmatpush1.msra.mxu0 0.0
        %1621 = vmatprep.subr.mxu0 0.0
        %1622 = vmatpush1.msra.mxu0 0.0
        %1623 = vmatprep.subr.mxu0 0.0
        %1624 = vmatpush1.msra.mxu0 0.0
        %1625 = vmatprep.subr.mxu0 0.0
        %1626 = vmatpush1.msra.mxu0 0.0
        %1627 = vmatprep.subr.mxu0 0.0
        %1628 = vmatpush1.msra.mxu0 0.0
        %1629 = vmatprep.subr.mxu0 0.0
        %1630 = vmatpush1.msra.mxu0 0.0
        %1631 = vmatprep.subr.mxu0 0.0
        %1632 = vmatpush1.msra.mxu0 0.0
        %1633 = vmatprep.subr.mxu0 0.0
        %1634 = vmatpush1.msra.mxu0 0.0
        %1635 = vmatprep.subr.mxu0 0.0
        %1636 = vmatpush1.msra.mxu0 0.0
        %1637 = vmatprep.subr.mxu0 0.0
        %1638 = vmatpush1.msra.mxu0 0.0
        %1639 = vmatprep.subr.mxu0 0.0
        %1640 = vmatpush1.msra.mxu0 0.0
        %1641 = vmatprep.subr.mxu0 0.0
        %1642 = vmatpush1.msra.mxu0 0.0
        %1643 = vmatprep.subr.mxu0 0.0
        %1644 = vmatpush1.msra.mxu0 0.0
        %1645 = vmatprep.subr.mxu0 0.0
        %1646 = vmatpush1.msra.mxu0 0.0
        %1647 = vmatprep.subr.mxu0 0.0
        %1648 = vmatpush1.msra.mxu0 0.0
        %1649 = vmatprep.subr.mxu0 0.0
        %1650 = vmatpush1.msra.mxu0 0.0
        %1651 = vmatprep.subr.mxu0 0.0
        %1652 = vmatpush1.msra.mxu0 0.0
        %1653 = vmatprep.subr.mxu0 0.0
        %1654 = vmatpush1.msra.mxu0 0.0
        %1655 = vmatprep.subr.mxu0 0.0
        %1656 = vmatpush1.msra.mxu0 0.0
        %1657 = vmatprep.subr.mxu0 0.0
        %1658 = vmatpush1.msra.mxu0 0.0
        %1659 = vmatprep.mubr.f32.mxu0 0.0
        %1660 = vmatmul.mubr.f32.gmra.mrb[0].mxu0 %v1593
        %v1661 = vpop.f32.mrb[0].mxu0
        %v1662 = vadd.f32 0.0, %v1661
        %v1663 = vpop.f32.mrb[0].mxu0
        %1664 = vdwg.mxu0
        %v1665 = vmul.f32 %v1443, %v1366
        %v1666 = vmul.f32 %v1516, %v1368
        %v1667 = vmul.f32 %v1589, %v1370
        %v1668 = vmul.f32 %v1662, %v1372
        %v1669 = vcombine.low %v1665, %v1667
        %v1670 = vcombine.high %v1665, %v1667
        %v1672 = vunpack.c.l.s4 1983009808
        %v1673 = vunpack.c.0.s8 %v1672
        %v1674 = vlaneseq
        %v1675 = vshrl.u32 %v1674, 7
        %v1676 = vsub.s32 %v1673, %v1675
        %v1677 = vrot.slane %v1669, %v1676
        %v1679 = vunpack.c.l.s4 1983009808
        %v1680 = vunpack.c.0.s8 %v1679
        %v1681 = vlaneseq
        %v1682 = vshrl.u32 %v1681, 7
        %v1683 = vsub.s32 %v1680, %v1682
        %v1684 = vrot.slane %v1670, %v1683
        %v1685 = vcombine.low %v1666, %v1668
        %v1686 = vcombine.high %v1666, %v1668
        %v1688 = vunpack.c.l.s4 1983009808
        %v1689 = vunpack.c.0.s8 %v1688
        %v1690 = vlaneseq
        %v1691 = vshrl.u32 %v1690, 7
        %v1692 = vsub.s32 %v1689, %v1691
        %v1693 = vrot.slane %v1685, %v1692
        %v1695 = vunpack.c.l.s4 1983009808
        %v1696 = vunpack.c.0.s8 %v1695
        %v1697 = vlaneseq
        %v1698 = vshrl.u32 %v1697, 7
        %v1699 = vsub.s32 %v1696, %v1698
        %v1700 = vrot.slane %v1686, %v1699
        %v1701 = vcombine.low %v1677, %v1693
        %v1702 = vcombine.high %v1677, %v1693
        %v1704 = vunpack.c.l.s4 1934713408
        %v1705 = vunpack.c.0.s8 %v1704
        %v1706 = vlaneseq
        %v1707 = vshrl.u32 %v1706, 7
        %v1708 = vsub.s32 %v1705, %v1707
        %v1709 = vrot.slane %v1701, %v1708
        %v1711 = vunpack.c.l.s4 1934713408
        %v1712 = vunpack.c.0.s8 %v1711
        %v1713 = vlaneseq
        %v1714 = vshrl.u32 %v1713, 7
        %v1715 = vsub.s32 %v1712, %v1714
        %v1716 = vrot.slane %v1702, %v1715
        %v1717 = vcombine.low %v1684, %v1700
        %v1718 = vcombine.high %v1684, %v1700
        %v1720 = vunpack.c.l.s4 1934713408
        %v1721 = vunpack.c.0.s8 %v1720
        %v1722 = vlaneseq
        %v1723 = vshrl.u32 %v1722, 7
        %v1724 = vsub.s32 %v1721, %v1723
        %v1725 = vrot.slane %v1717, %v1724
        %v1727 = vunpack.c.l.s4 1934713408
        %v1728 = vunpack.c.0.s8 %v1727
        %v1729 = vlaneseq
        %v1730 = vshrl.u32 %v1729, 7
        %v1731 = vsub.s32 %v1728, %v1730
        %v1732 = vrot.slane %v1718, %v1731
        %v1733 = vcombine.high %v1709, 0.0
        %v1734 = vcombine.high %v1716, 0.0
        %v1735 = vcombine.high %v1725, 0.0
        %v1736 = vcombine.high %v1732, 0.0
        %v1737 = vcombine.low %v1709, %v1716
        %v1739 = vunpack.c.l.s4 1983009808
        %v1740 = vunpack.c.0.s8 %v1739
        %v1741 = vlaneseq
        %v1742 = vshrl.u32 %v1741, 7
        %v1743 = vsub.s32 %v1740, %v1742
        %v1744 = vrot.slane %v1737, %v1743
        %v1745 = vcombine.low %v1733, %v1734
        %v1747 = vunpack.c.l.s4 1983009808
        %v1748 = vunpack.c.0.s8 %v1747
        %v1749 = vlaneseq
        %v1750 = vshrl.u32 %v1749, 7
        %v1751 = vsub.s32 %v1748, %v1750
        %v1752 = vrot.slane %v1745, %v1751
        %v1753 = vcombine.low %v1725, %v1732
        %v1755 = vunpack.c.l.s4 1983009808
        %v1756 = vunpack.c.0.s8 %v1755
        %v1757 = vlaneseq
        %v1758 = vshrl.u32 %v1757, 7
        %v1759 = vsub.s32 %v1756, %v1758
        %v1760 = vrot.slane %v1753, %v1759
        %v1761 = vcombine.low %v1735, %v1736
        %v1763 = vunpack.c.l.s4 1983009808
        %v1764 = vunpack.c.0.s8 %v1763
        %v1765 = vlaneseq
        %v1766 = vshrl.u32 %v1765, 7
        %v1767 = vsub.s32 %v1764, %v1766
        %v1768 = vrot.slane %v1761, %v1767
        %v1769 = vcombine.low %v1744, %v1752
        %v1770 = vcombine.high %v1744, %v1752
        %v1772 = vunpack.c.l.s4 1934713408
        %v1773 = vunpack.c.0.s8 %v1772
        %v1774 = vlaneseq
        %v1775 = vshrl.u32 %v1774, 7
        %v1776 = vsub.s32 %v1773, %v1775
        %v1777 = vrot.slane %v1769, %v1776
        %v1779 = vunpack.c.l.s4 1934713408
        %v1780 = vunpack.c.0.s8 %v1779
        %v1781 = vlaneseq
        %v1782 = vshrl.u32 %v1781, 7
        %v1783 = vsub.s32 %v1780, %v1782
        %v1784 = vrot.slane %v1770, %v1783
        %v1785 = vcombine.low %v1760, %v1768
        %v1786 = vcombine.high %v1760, %v1768
        %v1788 = vunpack.c.l.s4 1934713408
        %v1789 = vunpack.c.0.s8 %v1788
        %v1790 = vlaneseq
        %v1791 = vshrl.u32 %v1790, 7
        %v1792 = vsub.s32 %v1789, %v1791
        %v1793 = vrot.slane %v1785, %v1792
        %v1795 = vunpack.c.l.s4 1934713408
        %v1796 = vunpack.c.0.s8 %v1795
        %v1797 = vlaneseq
        %v1798 = vshrl.u32 %v1797, 7
        %v1799 = vsub.s32 %v1796, %v1798
        %v1800 = vrot.slane %v1786, %v1799
        %v1801 = vcombine.low %v1777, %v1793
        %v1802 = vcombine.high %v1777, %v1793
        %v1803 = vcombine.low %v1784, %v1800
        %v1804 = vcombine.high %v1784, %v1800
        %1806 = vrot.lane.b32.xlu0 %v1802, 8
        %v1807 = vpop.permute.xlu0 %1806
        %1810 = vrot.lane.b32.xlu0 %v1803, 16
        %v1811 = vpop.permute.xlu0 %1810
        %1814 = vrot.lane.b32.xlu0 %v1804, 24
        %v1815 = vpop.permute.xlu0 %1814
        %v1817 = vsel %vm1024, %v1801, %v1807
        %vm1818 = vcmask 130048
        %v1819 = vsel %vm1818, %v1817, %v1811
        %vm1820 = vcmask 195584
        %v1821 = vsel %vm1820, %v1819, %v1815
        %v1822 = vld [vmem:[#allocation10] sm:$0xff]
        %v1823 = vld [vmem:[#allocation10 + $0x8] sm:$0xff]
        %v1824 = vld [vmem:[#allocation10 + $0x10] sm:$0xff]
        %v1825 = vld [vmem:[#allocation10 + $0x18] sm:$0xff]
        %v1826 = vld [vmem:[%s6] sm:$0x1]
        %v1828 = vlaneseq
        %v1829 = vshrl.u32 %v1828, 7
        %v1830 = vsub.s32 0, %v1829
        %v1831 = vrot.slane %v1826, %v1830
        %v1834 = vsel %vm357, %v1821, 0
        %1836 = vmatprep.subr.mxu0 0.0
        %1837 = vmatpush1.msra.mxu0 %v1822
        %1838 = vmatprep.subr.mxu0 0.0
        %1839 = vmatpush1.msra.mxu0 %v1823
        %1840 = vmatprep.subr.mxu0 0.0
        %1841 = vmatpush1.msra.mxu0 %v1824
        %1842 = vmatprep.subr.mxu0 0.0
        %1843 = vmatpush1.msra.mxu0 %v1825
        %1844 = vmatprep.subr.mxu0 0.0
        %1845 = vmatpush1.msra.mxu0 0.0
        %1846 = vmatprep.subr.mxu0 0.0
        %1847 = vmatpush1.msra.mxu0 0.0
        %1848 = vmatprep.subr.mxu0 0.0
        %1849 = vmatpush1.msra.mxu0 0.0
        %1850 = vmatprep.subr.mxu0 0.0
        %1851 = vmatpush1.msra.mxu0 0.0
        %1852 = vmatprep.subr.mxu0 0.0
        %1853 = vmatpush1.msra.mxu0 0.0
        %1854 = vmatprep.subr.mxu0 0.0
        %1855 = vmatpush1.msra.mxu0 0.0
        %1856 = vmatprep.subr.mxu0 0.0
        %1857 = vmatpush1.msra.mxu0 0.0
        %1858 = vmatprep.subr.mxu0 0.0
        %1859 = vmatpush1.msra.mxu0 0.0
        %1860 = vmatprep.subr.mxu0 0.0
        %1861 = vmatpush1.msra.mxu0 0.0
        %1862 = vmatprep.subr.mxu0 0.0
        %1863 = vmatpush1.msra.mxu0 0.0
        %1864 = vmatprep.subr.mxu0 0.0
        %1865 = vmatpush1.msra.mxu0 0.0
        %1866 = vmatprep.subr.mxu0 0.0
        %1867 = vmatpush1.msra.mxu0 0.0
        %1868 = vmatprep.subr.mxu0 0.0
        %1869 = vmatpush1.msra.mxu0 0.0
        %1870 = vmatprep.subr.mxu0 0.0
        %1871 = vmatpush1.msra.mxu0 0.0
        %1872 = vmatprep.subr.mxu0 0.0
        %1873 = vmatpush1.msra.mxu0 0.0
        %1874 = vmatprep.subr.mxu0 0.0
        %1875 = vmatpush1.msra.mxu0 0.0
        %1876 = vmatprep.subr.mxu0 0.0
        %1877 = vmatpush1.msra.mxu0 0.0
        %1878 = vmatprep.subr.mxu0 0.0
        %1879 = vmatpush1.msra.mxu0 0.0
        %1880 = vmatprep.subr.mxu0 0.0
        %1881 = vmatpush1.msra.mxu0 0.0
        %1882 = vmatprep.subr.mxu0 0.0
        %1883 = vmatpush1.msra.mxu0 0.0
        %1884 = vmatprep.subr.mxu0 0.0
        %1885 = vmatpush1.msra.mxu0 0.0
        %1886 = vmatprep.subr.mxu0 0.0
        %1887 = vmatpush1.msra.mxu0 0.0
        %1888 = vmatprep.subr.mxu0 0.0
        %1889 = vmatpush1.msra.mxu0 0.0
        %1890 = vmatprep.subr.mxu0 0.0
        %1891 = vmatpush1.msra.mxu0 0.0
        %1892 = vmatprep.subr.mxu0 0.0
        %1893 = vmatpush1.msra.mxu0 0.0
        %1894 = vmatprep.subr.mxu0 0.0
        %1895 = vmatpush1.msra.mxu0 0.0
        %1896 = vmatprep.subr.mxu0 0.0
        %1897 = vmatpush1.msra.mxu0 0.0
        %1898 = vmatprep.subr.mxu0 0.0
        %1899 = vmatpush1.msra.mxu0 0.0
        %1900 = vmatprep.mubr.f32.mxu0 0.0
        %1901 = vmatmul.mubr.f32.gmra.mrb[0].mxu0 %v1834
        %v1902 = vpop.f32.mrb[0].mxu0
        %v1903 = vadd.f32 %v1831, %v1902
        %v1904 = vpop.f32.mrb[0].mxu0
        %1905 = vdwg.mxu0
        %1906 = vst.msk [vmem:[%s351] sm:$0xff] %vm357, %v1903
        %s1907 = sand.u32 %s186, 1
        %s1908 = scalar_lea.sflag [#allocation4], %s1907
        %s1909 = sand.u32 %s186, 1
        %s1910 = smul.addr %s1909, 8
        %s1911 = scalar_lea.vmem [#allocation11], %s1910
        // Predicated region
        $region69: #{tpu_custom_call.1} parent=47 // pred_check
          %p1912 = pneg %p196
        $region70: #{tpu_custom_call.1} parent=47 // pred_check_branch
          %1914 = sbr.rel (%p1912) target = $region72
        $region71: #{tpu_custom_call.1} parent=47 // pred_region
          %s1916 = ssub.s32 128, 128
          %1917 = vsyncadd %s1908, %s1916
          %s1918 = smul.addr %s26, 128
          %s1919 = scalar_lea.hbm %s7, %s1918
          %s1921 = sshll.u32 %s1911, 4
          %s1922 = int_to_ptr.vmem [resolvable:$true] %s1921
          %1924 = dma.vmem_to_hbm [thread:$0]  %s1922, 128, %s1919, %s1908
        $region72: #{tpu_custom_call.1} parent=47 // pred_fallthru
          _
      $region48: #{tpu_custom_call.1} parent=5 // pred_fallthru
        _
      %p1925 = scmp.le.s32.totalorder 2, %s21
      // Predicated region
      $region73: #{tpu_custom_call.1} parent=5 // pred_check
        %p1926 = pneg %p1925
      $region74: #{tpu_custom_call.1} parent=5 // pred_check_branch
        %1928 = sbr.rel (%p1926) target = $region76
      $region75: #{tpu_custom_call.1} parent=5 // pred_region
        %s1929 = ssub.s32 %s21, 2
        // Predicated region
        $region77: #{tpu_custom_call.1} parent=75 // pred_check
          %p1930 = pneg %p202
        $region78: #{tpu_custom_call.1} parent=75 // pred_check_branch
          %1932 = sbr.rel (%p1930) target = $region80
        $region79: #{tpu_custom_call.1} parent=75 // pred_region
          %s1933 = sand.u32 %s187, 1
          %s1934 = scalar_lea.sflag [#allocation4], %s1933
          %s1935 = sand.u32 %s187, 1
          %s1936 = smul.addr %s1935, 8
          %s1937 = scalar_lea.vmem [#allocation11], %s1936
          %1938 = dma.done %s1934, 128
        $region80: #{tpu_custom_call.1} parent=75 // pred_fallthru
          _
      $region76: #{tpu_custom_call.1} parent=5 // pred_fallthru
        _
    $region6: #{tpu_custom_call.1} parent=1 // loop_footer
      %s25 = sadd.s32 1, %s21
    $region7: #{tpu_custom_call.1} parent=1 // loop_footer_branch
      %20 = sbr.rel target = $region3
    $region8: #{tpu_custom_call.1} parent=1 // loop_exit
      _
    %1939 = vsyncpa [#allocation3], 1
    %s1940 = scalar_lea.sflag [#allocation3], 1
    %1941 = vsyncpa %s1940, 1
    %1942 = vsyncpa [#allocation6], 1
    %1943 = vsyncpa [#allocation9], 1
    %1944 = vsyncpa [#allocation4], 1
    %s1945 = scalar_lea.sflag [#allocation4], 1
    %1946 = vsyncpa %s1945, 1

</llo_original>
